<compile_context>
chip_gen: v7x
topology: tpu7x:2x2x1
jax: 0.10.0
libtpu: 0.0.40
codegen_flags: <defaults>
</compile_context>

<pallas_src>
import functools

import jax
import jax.numpy as jnp
from jax.experimental import pallas as pl
from jax.experimental.pallas import tpu as pltpu

LN_EPS = 1e-5
LANE = 128


def _round_up(x, m):
    return ((x + m - 1) // m) * m


def _pad2(a, rows, cols):
    return jnp.pad(a, ((0, rows - a.shape[0]), (0, cols - a.shape[1])))


def _hw_config():
    """Generation-aware (tile_n, tile_e, vmem_limit_bytes)."""
    kind = ""
    try:
        kind = jax.devices()[0].device_kind.lower()
    except Exception:
        pass
    cap = None
    try:
        cap = int(getattr(pltpu.get_tpu_info(), "vmem_capacity_bytes", 0)) or None
    except Exception:
        cap = None
    if cap is None:
        big = any(s in kind for s in ("v5 lite", "v5e", "v5litepod", "v6", "trillium"))
        cap = (128 << 20) if big else (64 << 20)
    if cap >= (96 << 20):                       # v5e / v6e: 128 MiB physical VMEM
        tile_n = 1024
        tile_e = 1024 if "v5" in kind else 2048  # v5e: 1 vst slot -> cap tile_e
        vmem_limit = 100 << 20
    else:                                        # v7x-class: 64 MiB per TensorCore
        tile_n, tile_e = 512, 1024
        vmem_limit = 48 << 20
    return tile_n, tile_e, vmem_limit


def _mesh_node_block_kernel(blk_lo_ref, blk_cnt_ref,                 # scalar prefetch (SMEM)
                            dst_ref, e_ref, x_ref,
                            w1e_ref, w1n_ref, b1_ref,
                            w2_ref, b2_ref, gamma_ref, beta_ref,
                            out_ref, agg_ref, *, tile_n, out_valid):
    i = pl.program_id(0)          # node-tile index   ("parallel")
    k = pl.program_id(1)          # edge-block step   ("arbitrary" reduction)

    @pl.when(k == 0)
    def _init():
        agg_ref[...] = jnp.zeros_like(agg_ref)

    # ---- CSR scatter-sum: only edge blocks belonging to this node tile do work ----
    @pl.when(k < blk_cnt_ref[i])
    def _scatter():
        e = e_ref[...]                                       # [tile_e, De_pad] (scatter dtype, e.g. bf16)
        dst_local = dst_ref[...] - i * tile_n                # [1, tile_e], offset on the small operand
        rows = jax.lax.broadcasted_iota(jnp.int32, (tile_n, dst_local.shape[1]), 0)
        onehot = (rows == dst_local).astype(e.dtype)         # 0/1 exact in bf16; built in vregs
        agg_ref[...] += jnp.dot(onehot, e, preferred_element_type=jnp.float32)

    # ---- MLP + LayerNorm + residual once, on the last edge step --------------------
    @pl.when(k == pl.num_programs(1) - 1)
    def _epilogue():
        x = x_ref[...].astype(jnp.float32)                   # [tile_n, Dn_pad]
        agg = agg_ref[...]                                   # f32 accumulator

        # Linear #1 over concat([agg, x]) == agg @ W1e + x @ W1n + b1, then SiLU
        h = (jnp.dot(agg, w1e_ref[...], preferred_element_type=jnp.float32)
             + jnp.dot(x, w1n_ref[...], preferred_element_type=jnp.float32)
             + b1_ref[...])
        h = h * jax.nn.sigmoid(h)

        # Linear #2
        o = jnp.dot(h, w2_ref[...], preferred_element_type=jnp.float32) + b2_ref[...]

        # LayerNorm over the valid out_dim columns (padded columns of o are exactly 0).
        mu = jnp.sum(o, axis=-1, keepdims=True) * (1.0 / out_valid)
        if out_valid == o.shape[-1]:          # trace-time: no lane masking needed
            c = o - mu
        else:
            lane_idx = jax.lax.broadcasted_iota(jnp.int32, o.shape, 1)
            c = jnp.where(lane_idx < out_valid, o - mu, 0.0)
        var = jnp.sum(c * c, axis=-1, keepdims=True) * (1.0 / out_valid)
        o = c * jax.lax.rsqrt(var + LN_EPS)
        o = o * gamma_ref[...] + beta_ref[...]                # padded gamma/beta are 0

        # residual (padded x columns are 0 -> padded output columns stay 0)
        out_ref[...] = (o + x).astype(out_ref.dtype)


def mesh_node_block(edge_feats, node_feats, dst_idx, params,
                    aggregation_op="sum", tile_n=None, tile_e=None,
                    scatter_dtype=None, vmem_limit_bytes=None):
    """Pallas-backed MeshNodeBlock.forward.

    edge_feats: [E, De]   node_feats: [N, Dn]   dst_idx: [E] int32 (edge -> dst node)
    Returns (edge_feats, node_feats_new) like the PyTorch module.
    """
    n_nodes, node_dim = node_feats.shape
    n_edges, edge_dim = edge_feats.shape
    w1e, w1n, b1, w2, b2, gamma, beta = params
    hidden_dim = w1e.shape[1]
    out_dim = w2.shape[1]
    assert out_dim == node_dim, "residual requires output_dim == nodes_input_dim"

    hw_tn, hw_te, hw_vmem = _hw_config()
    tile_n = hw_tn if tile_n is None else tile_n
    tile_e = hw_te if tile_e is None else tile_e
    vmem_limit_bytes = hw_vmem if vmem_limit_bytes is None else vmem_limit_bytes
    if scatter_dtype is None:
        scatter_dtype = jnp.bfloat16 if edge_feats.dtype == jnp.float32 else edge_feats.dtype

    # ---- lane-dense padding of all feature dims ---------------------------
    de_p = _round_up(edge_dim, LANE)
    dn_p = _round_up(node_dim, LANE)
    h_p = _round_up(hidden_dim, LANE)
    do_p = _round_up(out_dim, LANE)
    assert dn_p == do_p

    # ---- tile sizes: clamp to problem, keep >= 2 node tiles (v7x megacore) ----
    tile_n = max(8, min(tile_n, _round_up(n_nodes, 8)))
    if n_nodes > 8 and _round_up(n_nodes, tile_n) // tile_n < 2:
        tile_n = _round_up((n_nodes + 1) // 2, 8)
    tile_e = max(LANE, min(tile_e, _round_up(n_edges, LANE)))
    n_pad = _round_up(n_nodes, tile_n)
    e_pad = _round_up(n_edges, tile_e)
    num_n = n_pad // tile_n
    num_e = e_pad // tile_e

    # ---- CSR: sort edges by destination so each node tile owns a contiguous span ----
    order = jnp.argsort(dst_idx)
    dst_sorted = dst_idx[order].astype(jnp.int32)
    e_sorted = edge_feats[order]
    if aggregation_op == "mean":
        deg = jnp.zeros((n_nodes,), jnp.float32).at[dst_idx].add(1.0)
        e_sorted = e_sorted * (1.0 / jnp.maximum(deg, 1.0))[dst_sorted][:, None]
    elif aggregation_op != "sum":
        raise ValueError(f"unsupported aggregation_op: {aggregation_op}")

    # Per node tile: first edge block + number of edge blocks it must visit.
    tile_starts = jnp.arange(num_n, dtype=jnp.int32) * tile_n
    lo = jnp.searchsorted(dst_sorted, tile_starts).astype(jnp.int32)
    hi = jnp.searchsorted(dst_sorted, tile_starts + tile_n).astype(jnp.int32)
    blk_lo_raw = lo // tile_e
    blk_cnt = jnp.where(hi > lo, (hi - 1) // tile_e - blk_lo_raw + 1, 0).astype(jnp.int32)
    blk_lo = jnp.minimum(blk_lo_raw, num_e - 1).astype(jnp.int32)   # keep clamped step in range

    # ---- padded operands (edge stream already in the scatter dtype) -------
    e_p = _pad2(e_sorted, e_pad, de_p).astype(scatter_dtype)
    x_p = _pad2(node_feats, n_pad, dn_p)
    # pad-dst sentinel n_pad never matches any local row index in any tile
    dst2d = jnp.pad(dst_sorted, (0, e_pad - n_edges), constant_values=n_pad)[None, :]

    w1e_p = _pad2(w1e, de_p, h_p)
    w1n_p = _pad2(w1n, dn_p, h_p)
    b1_p = _pad2(b1, 1, h_p)
    w2_p = _pad2(w2, h_p, do_p)
    b2_p = _pad2(b2, 1, do_p)
    g_p = _pad2(gamma, 1, do_p)
    bt_p = _pad2(beta, 1, do_p)

    def edge_block(i, k, blk_lo_ref, blk_cnt_ref):
        # Clamp to the tile's own last block -> skipped steps re-use the same block (no DMA).
        last = jnp.maximum(blk_cnt_ref[i] - 1, 0)
        return blk_lo_ref[i] + jnp.minimum(k, last)

    def const(shape):  # weight/bias resident block (constant index map)
        return pl.BlockSpec(shape, lambda i, k, *_: (0, 0))

    kernel = functools.partial(_mesh_node_block_kernel, tile_n=tile_n, out_valid=out_dim)

    node_out_p = pl.pallas_call(
        kernel,
        out_shape=jax.ShapeDtypeStruct((n_pad, do_p), node_feats.dtype),
        grid_spec=pltpu.PrefetchScalarGridSpec(
            num_scalar_prefetch=2,
            grid=(num_n, num_e),
            in_specs=[
                pl.BlockSpec((1, tile_e),
                             lambda i, k, lo_r, cnt_r: (0, edge_block(i, k, lo_r, cnt_r))),
                pl.BlockSpec((tile_e, de_p),
                             lambda i, k, lo_r, cnt_r: (edge_block(i, k, lo_r, cnt_r), 0)),
                pl.BlockSpec((tile_n, dn_p), lambda i, k, *_: (i, 0)),
                const((de_p, h_p)), const((dn_p, h_p)), const((1, h_p)),
                const((h_p, do_p)), const((1, do_p)), const((1, do_p)), const((1, do_p)),
            ],
            out_specs=pl.BlockSpec((tile_n, do_p), lambda i, k, *_: (i, 0)),
            scratch_shapes=[pltpu.VMEM((tile_n, de_p), jnp.float32)],
        ),
        compiler_params=pltpu.CompilerParams(
            dimension_semantics=("parallel", "arbitrary"),
            vmem_limit_bytes=vmem_limit_bytes,
        ),
    )(blk_lo, blk_cnt, dst2d, e_p, x_p, w1e_p, w1n_p, b1_p, w2_p, b2_p, g_p, bt_p)

    return edge_feats, node_out_p[:n_nodes, :out_dim]


def init_params(key, node_dim, edge_dim, hidden_dim, out_dim):
    """Deterministic parameter init (MeshGraphMLP: Linear->SiLU->Linear->LayerNorm)."""
    k1, k2, k3, k4 = jax.random.split(key, 4)
    in_dim = node_dim + edge_dim
    s1 = 1.0 / jnp.sqrt(in_dim)
    s2 = 1.0 / jnp.sqrt(hidden_dim)
    # W1: [in_dim, hidden]; concat order is (aggregated_edge_feats, node_feats)
    w1 = jax.random.uniform(k1, (in_dim, hidden_dim), jnp.float32, -s1, s1)
    w1e, w1n = w1[:edge_dim], w1[edge_dim:]
    b1 = jax.random.uniform(k2, (1, hidden_dim), jnp.float32, -s1, s1)
    w2 = jax.random.uniform(k3, (hidden_dim, out_dim), jnp.float32, -s2, s2)
    b2 = jax.random.uniform(k4, (1, out_dim), jnp.float32, -s2, s2)
    gamma = jnp.ones((1, out_dim), jnp.float32)
    beta = jnp.zeros((1, out_dim), jnp.float32)
    return (w1e, w1n, b1, w2, b2, gamma, beta)


def reference(edge_feats, node_feats, dst_idx, params, aggregation_op="sum"):
    """Pure-JAX reference mirroring the PyTorch module (for validation)."""
    w1e, w1n, b1, w2, b2, gamma, beta = params
    n_nodes = node_feats.shape[0]
    agg = jnp.zeros((n_nodes, edge_feats.shape[1]), jnp.float32).at[dst_idx].add(edge_feats)
    if aggregation_op == "mean":
        deg = jnp.maximum(
            jnp.zeros((n_nodes, 1), jnp.float32).at[dst_idx].add(1.0), 1.0)
        agg = agg / deg
    cat = jnp.concatenate([agg, node_feats], axis=-1)
    w1 = jnp.concatenate([w1e, w1n], axis=0)
    h = cat @ w1 + b1
    h = h * jax.nn.sigmoid(h)
    o = h @ w2 + b2
    mu = jnp.mean(o, axis=-1, keepdims=True)
    var = jnp.mean((o - mu) ** 2, axis=-1, keepdims=True)
    o = (o - mu) * jax.lax.rsqrt(var + LN_EPS) * gamma + beta
    return edge_feats, o + node_feats


if __name__ == "__main__":
    # Small synthetic mesh graph.
    N_NODES, N_EDGES = 64, 128
    NODE_DIM, EDGE_DIM, HIDDEN_DIM, OUT_DIM = 32, 32, 64, 32

    key = jax.random.PRNGKey(0)
    k_e, k_n, k_d, k_p = jax.random.split(key, 4)
    edge_feats = jax.random.normal(k_e, (N_EDGES, EDGE_DIM), jnp.float32)
    node_feats = jax.random.normal(k_n, (N_NODES, NODE_DIM), jnp.float32)
    dst_idx = jax.random.randint(k_d, (N_EDGES,), 0, N_NODES, jnp.int32)
    params = init_params(k_p, NODE_DIM, EDGE_DIM, HIDDEN_DIM, OUT_DIM)

    # (agg_op, scatter dtype, atol, rtol); bf16 scatter uses a looser tolerance
    # because only the edge-feature cast loses mantissa (accumulation stays f32).
    cases = [
        ("sum", jnp.float32, 1e-4, 1e-4),
        ("mean", jnp.float32, 1e-4, 1e-4),
        ("sum", jnp.bfloat16, 5e-2, 5e-2),
    ]
    for agg_op, sdt, atol, rtol in cases:
        fwd = jax.jit(functools.partial(mesh_node_block, aggregation_op=agg_op,
                                        scatter_dtype=sdt))
        e_out, n_out = fwd(edge_feats, node_feats, dst_idx, params)
        jax.block_until_ready(n_out)

        e_ref, n_ref = reference(edge_feats, node_feats, dst_idx, params, agg_op)
        assert n_out.shape == n_ref.shape
        assert bool(jnp.allclose(n_out, n_ref, atol=atol, rtol=rtol)), \
            f"mismatch vs reference: agg_op={agg_op} scatter_dtype={sdt}"

    print("KERNEL_OK")
</pallas_src>

<mosaic_0001>
module attributes {stable_mosaic.version = 11 : i64} {
  func.func @_mesh_node_block_kernel(%arg0: i32, %arg1: i32, %arg2: memref<2xi32, #tpu.memory_space<smem>>, %arg3: memref<2xi32, #tpu.memory_space<smem>>, %arg4: memref<1x128xi32, #tpu.memory_space<vmem>>, %arg5: memref<128x128xf32, #tpu.memory_space<vmem>>, %arg6: memref<32x128xf32, #tpu.memory_space<vmem>>, %arg7: memref<128x128xf32, #tpu.memory_space<vmem>>, %arg8: memref<128x128xf32, #tpu.memory_space<vmem>>, %arg9: memref<1x128xf32, #tpu.memory_space<vmem>>, %arg10: memref<128x128xf32, #tpu.memory_space<vmem>>, %arg11: memref<1x128xf32, #tpu.memory_space<vmem>>, %arg12: memref<1x128xf32, #tpu.memory_space<vmem>>, %arg13: memref<1x128xf32, #tpu.memory_space<vmem>>, %arg14: memref<32x128xf32, #tpu.memory_space<vmem>>, %arg15: memref<32x128xf32, #tpu.memory_space<vmem>>) attributes {dimension_semantics = [#tpu.dimension_semantics<parallel>, #tpu.dimension_semantics<arbitrary>], iteration_bounds = array<i64: 2, 1>, scalar_prefetch = 2 : i64, scratch_operands = 1 : i64, tpu.core_type = #tpu.core_type<tc>, window_params = [{transform_indices = @transform_0, window_bounds = array<i64: 1, 128>}, {transform_indices = @transform_1, window_bounds = array<i64: 128, 128>}, {transform_indices = @transform_2, window_bounds = array<i64: 32, 128>}, {pipeline_mode = #tpu.pipeline_mode<synchronous>, transform_indices = @transform_3, window_bounds = array<i64: 128, 128>}, {pipeline_mode = #tpu.pipeline_mode<synchronous>, transform_indices = @transform_4, window_bounds = array<i64: 128, 128>}, {pipeline_mode = #tpu.pipeline_mode<synchronous>, transform_indices = @transform_5, window_bounds = array<i64: 1, 128>}, {pipeline_mode = #tpu.pipeline_mode<synchronous>, transform_indices = @transform_6, window_bounds = array<i64: 128, 128>}, {pipeline_mode = #tpu.pipeline_mode<synchronous>, transform_indices = @transform_7, window_bounds = array<i64: 1, 128>}, {pipeline_mode = #tpu.pipeline_mode<synchronous>, transform_indices = @transform_8, window_bounds = array<i64: 1, 128>}, {pipeline_mode = #tpu.pipeline_mode<synchronous>, transform_indices = @transform_9, window_bounds = array<i64: 1, 128>}, {transform_indices = @transform_10, window_bounds = array<i64: 32, 128>}]} {
    %c0_i32 = arith.constant 0 : i32
    %0 = arith.cmpi eq, %arg1, %c0_i32 : i32
    %1 = arith.extui %0 : i1 to i32
    %c0_i32_0 = arith.constant 0 : i32
    %2 = arith.cmpi ne, %1, %c0_i32_0 : i32
    scf.if %2 {
      %cst = arith.constant 0.000000e+00 : f32
      %11 = vector.broadcast %cst : f32 to vector<32x128xf32>
      %c0 = arith.constant 0 : index
      %c0_4 = arith.constant 0 : index
      %12 = vector.load %arg15[%c0, %c0_4] : memref<32x128xf32, #tpu.memory_space<vmem>>, vector<32x128xf32>
      tpu.vector_store %arg15[%c0, %c0_4], %11 {strides = array<i32>} : memref<32x128xf32, #tpu.memory_space<vmem>>, vector<32x128xf32>,
    } else {
    }
    %3 = arith.index_cast %arg0 : i32 to index
    %4 = memref.load %arg3[%3] : memref<2xi32, #tpu.memory_space<smem>>
    %5 = arith.cmpi slt, %arg1, %4 : i32
    %6 = arith.extui %5 : i1 to i32
    %c0_i32_1 = arith.constant 0 : i32
    %7 = arith.cmpi ne, %6, %c0_i32_1 : i32
    scf.if %7 {
      %c0 = arith.constant 0 : index
      %c0_4 = arith.constant 0 : index
      %11 = vector.load %arg5[%c0, %c0_4] : memref<128x128xf32, #tpu.memory_space<vmem>>, vector<128x128xf32>
      %c0_5 = arith.constant 0 : index
      %c0_6 = arith.constant 0 : index
      %12 = vector.load %arg4[%c0_5, %c0_6] : memref<1x128xi32, #tpu.memory_space<vmem>>, vector<1x128xi32>
      %c32_i32 = arith.constant 32 : i32
      %13 = arith.muli %arg0, %c32_i32 : i32
      %14 = vector.broadcast %13 : i32 to vector<1x128xi32>
      %15 = arith.subi %12, %14 : vector<1x128xi32>
      %16 = tpu.iota {dimensions = array<i32: 0>} : vector<32x128xi32>
      %17 = vector.broadcast %15 : vector<1x128xi32> to vector<32x128xi32>
      %18 = arith.cmpi eq, %16, %17 : vector<32x128xi32>
      %19 = arith.extui %18 : vector<32x128xi1> to vector<32x128xi32>
      %20 = arith.sitofp %19 : vector<32x128xi32> to vector<32x128xf32>
      %c0_7 = arith.constant 0 : index
      %c0_8 = arith.constant 0 : index
      %21 = vector.load %arg15[%c0_7, %c0_8] : memref<32x128xf32, #tpu.memory_space<vmem>>, vector<32x128xf32>
      %cst = arith.constant dense<0.000000e+00> : vector<32x128xf32>
      %22 = tpu.matmul %20, %11, %cst {dimension_numbers = #tpu.dot_dimension_numbers<[1], [0], [0], [1], [0, 0, 1, 1], [], []>} : vector<32x128xf32>, vector<128x128xf32>, vector<32x128xf32> -> vector<32x128xf32>
      %23 = arith.addf %21, %22 : vector<32x128xf32>
      %c0_9 = arith.constant 0 : index
      %c0_10 = arith.constant 0 : index
      %24 = vector.load %arg15[%c0_9, %c0_10] : memref<32x128xf32, #tpu.memory_space<vmem>>, vector<32x128xf32>
      tpu.vector_store %arg15[%c0_9, %c0_10], %23 {strides = array<i32>} : memref<32x128xf32, #tpu.memory_space<vmem>>, vector<32x128xf32>,
    } else {
    }
    %c0_i32_2 = arith.constant 0 : i32
    %8 = arith.cmpi eq, %arg1, %c0_i32_2 : i32
    %9 = arith.extui %8 : i1 to i32
    %c0_i32_3 = arith.constant 0 : i32
    %10 = arith.cmpi ne, %9, %c0_i32_3 : i32
    scf.if %10 {
      %c0 = arith.constant 0 : index
      %c0_4 = arith.constant 0 : index
      %11 = vector.load %arg6[%c0, %c0_4] : memref<32x128xf32, #tpu.memory_space<vmem>>, vector<32x128xf32>
      %c0_5 = arith.constant 0 : index
      %c0_6 = arith.constant 0 : index
      %12 = vector.load %arg15[%c0_5, %c0_6] : memref<32x128xf32, #tpu.memory_space<vmem>>, vector<32x128xf32>
      %c0_7 = arith.constant 0 : index
      %c0_8 = arith.constant 0 : index
      %13 = vector.load %arg7[%c0_7, %c0_8] : memref<128x128xf32, #tpu.memory_space<vmem>>, vector<128x128xf32>
      %cst = arith.constant dense<0.000000e+00> : vector<32x128xf32>
      %14 = tpu.matmul %12, %13, %cst {dimension_numbers = #tpu.dot_dimension_numbers<[1], [0], [0], [1], [0, 0, 1, 1], [], []>} : vector<32x128xf32>, vector<128x128xf32>, vector<32x128xf32> -> vector<32x128xf32>
      %c0_9 = arith.constant 0 : index
      %c0_10 = arith.constant 0 : index
      %15 = vector.load %arg8[%c0_9, %c0_10] : memref<128x128xf32, #tpu.memory_space<vmem>>, vector<128x128xf32>
      %cst_11 = arith.constant dense<0.000000e+00> : vector<32x128xf32>
      %16 = tpu.matmul %11, %15, %cst_11 {dimension_numbers = #tpu.dot_dimension_numbers<[1], [0], [0], [1], [0, 0, 1, 1], [], []>} : vector<32x128xf32>, vector<128x128xf32>, vector<32x128xf32> -> vector<32x128xf32>
      %17 = arith.addf %14, %16 : vector<32x128xf32>
      %c0_12 = arith.constant 0 : index
      %c0_13 = arith.constant 0 : index
      %18 = vector.load %arg9[%c0_12, %c0_13] : memref<1x128xf32, #tpu.memory_space<vmem>>, vector<1x128xf32>
      %19 = vector.broadcast %18 : vector<1x128xf32> to vector<32x128xf32>
      %20 = arith.addf %17, %19 : vector<32x128xf32>
      %21 = arith.negf %20 : vector<32x128xf32>
      %22 = math.exp %21 : vector<32x128xf32>
      %cst_14 = arith.constant 1.000000e+00 : f32
      %23 = vector.broadcast %cst_14 : f32 to vector<32x128xf32>
      %24 = arith.addf %23, %22 : vector<32x128xf32>
      %25 = arith.divf %23, %24 : vector<32x128xf32>
      %26 = arith.mulf %20, %25 : vector<32x128xf32>
      %c0_15 = arith.constant 0 : index
      %c0_16 = arith.constant 0 : index
      %27 = vector.load %arg10[%c0_15, %c0_16] : memref<128x128xf32, #tpu.memory_space<vmem>>, vector<128x128xf32>
      %cst_17 = arith.constant dense<0.000000e+00> : vector<32x128xf32>
      %28 = tpu.matmul %26, %27, %cst_17 {dimension_numbers = #tpu.dot_dimension_numbers<[1], [0], [0], [1], [0, 0, 1, 1], [], []>} : vector<32x128xf32>, vector<128x128xf32>, vector<32x128xf32> -> vector<32x128xf32>
      %c0_18 = arith.constant 0 : index
      %c0_19 = arith.constant 0 : index
      %29 = vector.load %arg11[%c0_18, %c0_19] : memref<1x128xf32, #tpu.memory_space<vmem>>, vector<1x128xf32>
      %30 = vector.broadcast %29 : vector<1x128xf32> to vector<32x128xf32>
      %31 = arith.addf %28, %30 : vector<32x128xf32>
      %cst_20 = arith.constant dense<0.000000e+00> : vector<32xf32>
      %32 = vector.multi_reduction <add>, %31, %cst_20 [1] : vector<32x128xf32> to vector<32xf32>
      %33 = vector.shape_cast %32 : vector<32xf32> to vector<32x1xf32>
      %cst_21 = arith.constant 3.125000e-02 : f32
      %34 = vector.broadcast %cst_21 : f32 to vector<32x1xf32>
      %35 = arith.mulf %33, %34 : vector<32x1xf32>
      %36 = tpu.iota {dimensions = array<i32: 1>} : vector<32x128xi32>
      %c32_i32 = arith.constant 32 : i32
      %37 = vector.broadcast %c32_i32 : i32 to vector<32x128xi32>
      %38 = arith.cmpi slt, %36, %37 : vector<32x128xi32>
      %39 = vector.broadcast %35 : vector<32x1xf32> to vector<32x128xf32>
      %40 = arith.subf %31, %39 : vector<32x128xf32>
      %cst_22 = arith.constant 0.000000e+00 : f32
      %41 = vector.broadcast %cst_22 : f32 to vector<32x128xf32>
      %42 = arith.select %38, %40, %41 : vector<32x128xi1>, vector<32x128xf32>
      %43 = arith.mulf %42, %42 : vector<32x128xf32>
      %cst_23 = arith.constant dense<0.000000e+00> : vector<32xf32>
      %44 = vector.multi_reduction <add>, %43, %cst_23 [1] : vector<32x128xf32> to vector<32xf32>
      %45 = vector.shape_cast %44 : vector<32xf32> to vector<32x1xf32>
      %cst_24 = arith.constant 3.125000e-02 : f32
      %46 = vector.broadcast %cst_24 : f32 to vector<32x1xf32>
      %47 = arith.mulf %45, %46 : vector<32x1xf32>
      %cst_25 = arith.constant 9.99999974E-6 : f32
      %48 = vector.broadcast %cst_25 : f32 to vector<32x1xf32>
      %49 = arith.addf %47, %48 : vector<32x1xf32>
      %50 = math.rsqrt %49 : vector<32x1xf32>
      %51 = vector.broadcast %50 : vector<32x1xf32> to vector<32x128xf32>
      %52 = arith.mulf %42, %51 : vector<32x128xf32>
      %c0_26 = arith.constant 0 : index
      %c0_27 = arith.constant 0 : index
      %53 = vector.load %arg12[%c0_26, %c0_27] : memref<1x128xf32, #tpu.memory_space<vmem>>, vector<1x128xf32>
      %54 = vector.broadcast %53 : vector<1x128xf32> to vector<32x128xf32>
      %55 = arith.mulf %52, %54 : vector<32x128xf32>
      %c0_28 = arith.constant 0 : index
      %c0_29 = arith.constant 0 : index
      %56 = vector.load %arg13[%c0_28, %c0_29] : memref<1x128xf32, #tpu.memory_space<vmem>>, vector<1x128xf32>
      %57 = vector.broadcast %56 : vector<1x128xf32> to vector<32x128xf32>
      %58 = arith.addf %55, %57 : vector<32x128xf32>
      %59 = arith.addf %58, %11 : vector<32x128xf32>
      %c0_30 = arith.constant 0 : index
      %c0_31 = arith.constant 0 : index
      %60 = vector.load %arg14[%c0_30, %c0_31] : memref<32x128xf32, #tpu.memory_space<vmem>>, vector<32x128xf32>
      tpu.vector_store %arg14[%c0_30, %c0_31], %59 {strides = array<i32>} : memref<32x128xf32, #tpu.memory_space<vmem>>, vector<32x128xf32>,
    } else {
    }
    return
  }
  func.func @transform_0(%arg0: i32, %arg1: i32, %arg2: memref<2xi32, #tpu.memory_space<smem>>, %arg3: memref<2xi32, #tpu.memory_space<smem>>) -> (i32, i32) {
    %0 = arith.index_cast %arg0 : i32 to index
    %1 = memref.load %arg3[%0] : memref<2xi32, #tpu.memory_space<smem>>
    %c1_i32 = arith.constant 1 : i32
    %2 = arith.subi %1, %c1_i32 : i32
    %c0_i32 = arith.constant 0 : i32
    %3 = arith.maxsi %2, %c0_i32 : i32
    %4 = arith.index_cast %arg0 : i32 to index
    %5 = memref.load %arg2[%4] : memref<2xi32, #tpu.memory_space<smem>>
    %6 = arith.minsi %arg1, %3 : i32
    %7 = arith.addi %5, %6 : i32
    %c0_i32_0 = arith.constant 0 : i32
    %c0_i32_1 = arith.constant 0 : i32
    return %c0_i32_0, %7 : i32, i32
  }
  func.func @transform_1(%arg0: i32, %arg1: i32, %arg2: memref<2xi32, #tpu.memory_space<smem>>, %arg3: memref<2xi32, #tpu.memory_space<smem>>) -> (i32, i32) {
    %0 = arith.index_cast %arg0 : i32 to index
    %1 = memref.load %arg3[%0] : memref<2xi32, #tpu.memory_space<smem>>
    %c1_i32 = arith.constant 1 : i32
    %2 = arith.subi %1, %c1_i32 : i32
    %c0_i32 = arith.constant 0 : i32
    %3 = arith.maxsi %2, %c0_i32 : i32
    %4 = arith.index_cast %arg0 : i32 to index
    %5 = memref.load %arg2[%4] : memref<2xi32, #tpu.memory_space<smem>>
    %6 = arith.minsi %arg1, %3 : i32
    %7 = arith.addi %5, %6 : i32
    %c0_i32_0 = arith.constant 0 : i32
    %c0_i32_1 = arith.constant 0 : i32
    return %7, %c0_i32_0 : i32, i32
  }
  func.func @transform_2(%arg0: i32, %arg1: i32, %arg2: memref<2xi32, #tpu.memory_space<smem>>, %arg3: memref<2xi32, #tpu.memory_space<smem>>) -> (i32, i32) {
    %c0_i32 = arith.constant 0 : i32
    %c0_i32_0 = arith.constant 0 : i32
    return %arg0, %c0_i32 : i32, i32
  }
  func.func @transform_3(%arg0: i32, %arg1: i32, %arg2: memref<2xi32, #tpu.memory_space<smem>>, %arg3: memref<2xi32, #tpu.memory_space<smem>>) -> (i32, i32) {
    %c0_i32 = arith.constant 0 : i32
    %c0_i32_0 = arith.constant 0 : i32
    %c0_i32_1 = arith.constant 0 : i32
    return %c0_i32, %c0_i32_0 : i32, i32
  }
  func.func @transform_4(%arg0: i32, %arg1: i32, %arg2: memref<2xi32, #tpu.memory_space<smem>>, %arg3: memref<2xi32, #tpu.memory_space<smem>>) -> (i32, i32) {
    %c0_i32 = arith.constant 0 : i32
    %c0_i32_0 = arith.constant 0 : i32
    %c0_i32_1 = arith.constant 0 : i32
    return %c0_i32, %c0_i32_0 : i32, i32
  }
  func.func @transform_5(%arg0: i32, %arg1: i32, %arg2: memref<2xi32, #tpu.memory_space<smem>>, %arg3: memref<2xi32, #tpu.memory_space<smem>>) -> (i32, i32) {
    %c0_i32 = arith.constant 0 : i32
    %c0_i32_0 = arith.constant 0 : i32
    %c0_i32_1 = arith.constant 0 : i32
    return %c0_i32, %c0_i32_0 : i32, i32
  }
  func.func @transform_6(%arg0: i32, %arg1: i32, %arg2: memref<2xi32, #tpu.memory_space<smem>>, %arg3: memref<2xi32, #tpu.memory_space<smem>>) -> (i32, i32) {
    %c0_i32 = arith.constant 0 : i32
    %c0_i32_0 = arith.constant 0 : i32
    %c0_i32_1 = arith.constant 0 : i32
    return %c0_i32, %c0_i32_0 : i32, i32
  }
  func.func @transform_7(%arg0: i32, %arg1: i32, %arg2: memref<2xi32, #tpu.memory_space<smem>>, %arg3: memref<2xi32, #tpu.memory_space<smem>>) -> (i32, i32) {
    %c0_i32 = arith.constant 0 : i32
    %c0_i32_0 = arith.constant 0 : i32
    %c0_i32_1 = arith.constant 0 : i32
    return %c0_i32, %c0_i32_0 : i32, i32
  }
  func.func @transform_8(%arg0: i32, %arg1: i32, %arg2: memref<2xi32, #tpu.memory_space<smem>>, %arg3: memref<2xi32, #tpu.memory_space<smem>>) -> (i32, i32) {
    %c0_i32 = arith.constant 0 : i32
    %c0_i32_0 = arith.constant 0 : i32
    %c0_i32_1 = arith.constant 0 : i32
    return %c0_i32, %c0_i32_0 : i32, i32
  }
  func.func @transform_9(%arg0: i32, %arg1: i32, %arg2: memref<2xi32, #tpu.memory_space<smem>>, %arg3: memref<2xi32, #tpu.memory_space<smem>>) -> (i32, i32) {
    %c0_i32 = arith.constant 0 : i32
    %c0_i32_0 = arith.constant 0 : i32
    %c0_i32_1 = arith.constant 0 : i32
    return %c0_i32, %c0_i32_0 : i32, i32
  }
  func.func @transform_10(%arg0: i32, %arg1: i32, %arg2: memref<2xi32, #tpu.memory_space<smem>>, %arg3: memref<2xi32, #tpu.memory_space<smem>>) -> (i32, i32) {
    %c0_i32 = arith.constant 0 : i32
    %c0_i32_0 = arith.constant 0 : i32
    return %arg0, %c0_i32 : i32, i32
  }
}

</mosaic_0001>

<llo_original>
// kernel: custom-call
$region0: #{custom-call}
  %s0 = inlined_call_operand.vmem [shape: u32[2], index: 0, kind: output, shape index: {}]

// kernel: mesh_node_block.1
$region0: #{mesh_node_block.1}
  #allocation0 [shape = 'u32[]', space=smem, size = 0x4, offset = 0x4, fixed_abs, tag = 'smem constant byte address 0x4 - core index']
  #allocation1 [shape = 'u32[144,128]{1,0:T(1,128)}', space=vmem, size = 0x12000, scoped, tag = 'internal scratch']
  #allocation2 [shape = 'f32[32,128]{1,0:T(8,128)}', space=vmem, size = 0x4000, scoped, tag = 'scratch operand']
  #allocation3 [shape = 's32[1]{0}', space=sflag, size = 0x4, scoped, tag = 'scoped memory for mesh_node_block.1']
  #allocation4 [shape = 'u8[512]{0}', space=smem, size = 0x200, scoped, tag = 'prefetched SMEM operand 0']
  #allocation5 [shape = 'u8[512]{0}', space=smem, size = 0x200, scoped, tag = 'prefetched SMEM operand 1']
  %s0 = inlined_call_operand.vmem [shape: s32[2], index: 0, kind: input, shape index: {}]
  %s1 = inlined_call_operand.vmem [shape: s32[2], index: 1, kind: input, shape index: {}]
  %s2 = inlined_call_operand.vmem [shape: s32[1,128], index: 2, kind: input, shape index: {}]
  %s3 = inlined_call_operand.vmem [shape: f32[128,128], index: 3, kind: input, shape index: {}]
  %s4 = inlined_call_operand.vmem [shape: f32[64,128], index: 4, kind: input, shape index: {}]
  %s5 = inlined_call_operand.vmem [shape: f32[128,128], index: 5, kind: input, shape index: {}]
  %s6 = inlined_call_operand.vmem [shape: f32[128,128], index: 6, kind: input, shape index: {}]
  %s7 = inlined_call_operand.vmem [shape: f32[1,128], index: 7, kind: input, shape index: {}]
  %s8 = inlined_call_operand.vmem [shape: f32[128,128], index: 8, kind: input, shape index: {}]
  %s9 = inlined_call_operand.vmem [shape: f32[1,128], index: 9, kind: input, shape index: {}]
  %s10 = inlined_call_operand.vmem [shape: f32[1,128], index: 10, kind: input, shape index: {}]
  %s11 = inlined_call_operand.vmem [shape: f32[1,128], index: 11, kind: input, shape index: {}]
  %s12 = inlined_call_operand.vmem [shape: f32[64,128], index: 12, kind: output, shape index: {}]
  %s13 = sld [smem:[#allocation0]]
  $region85: #{mesh_node_block.1} parent=0
    _
  %s15 = ssub.s32 1, %s13
  %s16 = scalar_select 0, %s15, %s13
  %s17 = sshll.u32 %s0, 4
  %s18 = int_to_ptr.vmem [resolvable:$true] %s17
  %20 = dma.vmem_to_smem %s18, 16, [#allocation4], [#allocation3]
  %s21 = sshll.u32 %s1, 4
  %s22 = int_to_ptr.vmem [resolvable:$true] %s21
  %24 = dma.vmem_to_smem %s22, 16, [#allocation5], [#allocation3]
  %25 = dma.done [#allocation3], 32
  %26 = sfence
  loop: start=0, step=1, limit=4
  $region2: #{mesh_node_block.1} parent=0 // loop_pre_header
    _
  $region3: #{mesh_node_block.1} parent=0 // loop_header
    %s28 = sphi 0, %s32
    %p29 = scmp.ge.s32.totalorder %s28, 4
    %s35 = sphi 0, %s47
    %s36 = sphi 0, %s43
    %s37 = sphi 0, %s35
    %s38 = sphi 0, %s36
    %s39 = sphi 0, %s37
    %s40 = sphi 0, %s38
    %s66 = sphi 0, %s68
    %s69 = sphi 0, %s66
    %s70 = sphi 0, %s69
    %s86 = sphi 0, %s70
    %s108 = sphi 0, %s110
    %s111 = sphi 0, %s108
    %s112 = sphi 0, %s111
    %s128 = sphi 0, %s112
    %s134 = sphi 0, %s136
    %s137 = sphi 0, %s134
    %s138 = sphi 0, %s137
    %s154 = sphi 0, %s138
    %s158 = sphi 0, %s158
    %s160 = sphi 0, %s158
    %s161 = sphi 0, %s160
    %s175 = sphi 0, %s161
    %s179 = sphi 0, %s179
    %s181 = sphi 0, %s179
    %s182 = sphi 0, %s181
    %s196 = sphi 0, %s182
    %s200 = sphi 0, %s200
    %s202 = sphi 0, %s200
    %s203 = sphi 0, %s202
    %s217 = sphi 0, %s203
    %s221 = sphi 0, %s221
    %s223 = sphi 0, %s221
    %s224 = sphi 0, %s223
    %s238 = sphi 0, %s224
    %s242 = sphi 0, %s242
    %s244 = sphi 0, %s242
    %s245 = sphi 0, %s244
    %s259 = sphi 0, %s245
    %s263 = sphi 0, %s263
    %s265 = sphi 0, %s263
    %s266 = sphi 0, %s265
    %s280 = sphi 0, %s266
    %s284 = sphi 0, %s284
    %s286 = sphi 0, %s284
    %s287 = sphi 0, %s286
    %s301 = sphi 0, %s287
    %s307 = sphi 0, %s309
    %s310 = sphi 0, %s307
    %s311 = sphi 0, %s310
    %s327 = sphi 0, %s311
  $region4: #{mesh_node_block.1} parent=0 // loop_header_branch
    %31 = sbr.rel (%p29) target = $region8
  $region5: #{mesh_node_block.1} parent=0 // loop_body
    %s33 = ssub.s32 %s28, 1
    %s34 = ssub.s32 %s28, 2
    %s41 = sadd.s32 1, %s36
    %p42 = scmp.ge.s32.totalorder %s41, 1
    %s43 = scalar_select %p42, 0, %s41
    %s44 = sadd.s32 1, %s35
    %s45 = scalar_select %p42, %s44, %s35
    %p46 = scmp.ge.s32.totalorder %s45, 2
    %s47 = scalar_select %p46, 0, %s45
    %s48 = sld [smem:[#allocation5 + %s35]]
    %s49 = ssub.s32 %s48, 1
    %p50 = scmp.gt.s32.totalorder %s49, 0
    %s51 = scalar_select %p50, %s49, 0
    %s52 = sld [smem:[#allocation4 + %s35]]
    %p53 = scmp.lt.s32.totalorder %s36, %s51
    %s54 = scalar_select %p53, %s36, %s51
    %s55 = sadd.s32 %s52, %s54
    %s56 = sld [smem:[#allocation5 + %s47]]
    %s57 = ssub.s32 %s56, 1
    %p58 = scmp.gt.s32.totalorder %s57, 0
    %s59 = scalar_select %p58, %s57, 0
    %s60 = sld [smem:[#allocation4 + %s47]]
    %p61 = scmp.lt.s32.totalorder %s43, %s59
    %s62 = scalar_select %p61, %s43, %s59
    %s63 = sadd.s32 %s60, %s62
    %s64 = ssub.s32 %s55, %s63
    %p65 = scmp.eq.s32.totalorder %s64, 0
    %s67 = sadd.s32 %s66, 1
    %s68 = scalar_select %p65, %s66, %s67
    %p71 = pneg %p65
    %p72 = scmp.eq.s32.totalorder %s28, 1
    %p73 = por %p71, %p72
    %p74 = scmp.ne.s32.totalorder %s66, %s69
    %p75 = scmp.eq.s32.totalorder %s28, 0
    %p76 = por %p74, %p75
    %p77 = scmp.ne.s32.totalorder %s66, %s69
    %p78 = scmp.eq.s32.totalorder %s33, 1
    %p79 = por %p77, %p78
    %p80 = scmp.ne.s32.totalorder %s69, %s70
    %p81 = scmp.eq.s32.totalorder %s33, 0
    %p82 = por %p80, %p81
    %p83 = scmp.ne.s32.totalorder %s69, %s70
    %p84 = scmp.eq.s32.totalorder %s34, 1
    %p85 = por %p83, %p84
    %p87 = scmp.ne.s32.totalorder %s70, %s86
    %p88 = scmp.eq.s32.totalorder %s34, 0
    %p89 = por %p87, %p88
    %s90 = sld [smem:[#allocation5 + %s35]]
    %s91 = ssub.s32 %s90, 1
    %p92 = scmp.gt.s32.totalorder %s91, 0
    %s93 = scalar_select %p92, %s91, 0
    %s94 = sld [smem:[#allocation4 + %s35]]
    %p95 = scmp.lt.s32.totalorder %s36, %s93
    %s96 = scalar_select %p95, %s36, %s93
    %s97 = sadd.s32 %s94, %s96
    %s98 = sld [smem:[#allocation5 + %s47]]
    %s99 = ssub.s32 %s98, 1
    %p100 = scmp.gt.s32.totalorder %s99, 0
    %s101 = scalar_select %p100, %s99, 0
    %s102 = sld [smem:[#allocation4 + %s47]]
    %p103 = scmp.lt.s32.totalorder %s43, %s101
    %s104 = scalar_select %p103, %s43, %s101
    %s105 = sadd.s32 %s102, %s104
    %s106 = ssub.s32 %s97, %s105
    %p107 = scmp.eq.s32.totalorder %s106, 0
    %s109 = sadd.s32 %s108, 1
    %s110 = scalar_select %p107, %s108, %s109
    %p113 = pneg %p107
    %p114 = scmp.eq.s32.totalorder %s28, 1
    %p115 = por %p113, %p114
    %p116 = scmp.ne.s32.totalorder %s108, %s111
    %p117 = scmp.eq.s32.totalorder %s28, 0
    %p118 = por %p116, %p117
    %p119 = scmp.ne.s32.totalorder %s108, %s111
    %p120 = scmp.eq.s32.totalorder %s33, 1
    %p121 = por %p119, %p120
    %p122 = scmp.ne.s32.totalorder %s111, %s112
    %p123 = scmp.eq.s32.totalorder %s33, 0
    %p124 = por %p122, %p123
    %p125 = scmp.ne.s32.totalorder %s111, %s112
    %p126 = scmp.eq.s32.totalorder %s34, 1
    %p127 = por %p125, %p126
    %p129 = scmp.ne.s32.totalorder %s112, %s128
    %p130 = scmp.eq.s32.totalorder %s34, 0
    %p131 = por %p129, %p130
    %s132 = ssub.s32 %s35, %s47
    %p133 = scmp.eq.s32.totalorder %s132, 0
    %s135 = sadd.s32 %s134, 1
    %s136 = scalar_select %p133, %s134, %s135
    %p139 = pneg %p133
    %p140 = scmp.eq.s32.totalorder %s28, 1
    %p141 = por %p139, %p140
    %p142 = scmp.ne.s32.totalorder %s134, %s137
    %p143 = scmp.eq.s32.totalorder %s28, 0
    %p144 = por %p142, %p143
    %p145 = scmp.ne.s32.totalorder %s134, %s137
    %p146 = scmp.eq.s32.totalorder %s33, 1
    %p147 = por %p145, %p146
    %p148 = scmp.ne.s32.totalorder %s137, %s138
    %p149 = scmp.eq.s32.totalorder %s33, 0
    %p150 = por %p148, %p149
    %p151 = scmp.ne.s32.totalorder %s137, %s138
    %p152 = scmp.eq.s32.totalorder %s34, 1
    %p153 = por %p151, %p152
    %p155 = scmp.ne.s32.totalorder %s138, %s154
    %p156 = scmp.eq.s32.totalorder %s34, 0
    %p157 = por %p155, %p156
    %s159 = sadd.s32 %s158, 1
    %p162 = scmp.eq.s32.totalorder %s28, 1
    %p163 = scmp.ne.s32.totalorder %s158, %s160
    %p164 = scmp.eq.s32.totalorder %s28, 0
    %p165 = por %p163, %p164
    %p166 = scmp.ne.s32.totalorder %s158, %s160
    %p167 = scmp.eq.s32.totalorder %s33, 1
    %p168 = por %p166, %p167
    %p169 = scmp.ne.s32.totalorder %s160, %s161
    %p170 = scmp.eq.s32.totalorder %s33, 0
    %p171 = por %p169, %p170
    %p172 = scmp.ne.s32.totalorder %s160, %s161
    %p173 = scmp.eq.s32.totalorder %s34, 1
    %p174 = por %p172, %p173
    %p176 = scmp.ne.s32.totalorder %s161, %s175
    %p177 = scmp.eq.s32.totalorder %s34, 0
    %p178 = por %p176, %p177
    %s180 = sadd.s32 %s179, 1
    %p183 = scmp.eq.s32.totalorder %s28, 1
    %p184 = scmp.ne.s32.totalorder %s179, %s181
    %p185 = scmp.eq.s32.totalorder %s28, 0
    %p186 = por %p184, %p185
    %p187 = scmp.ne.s32.totalorder %s179, %s181
    %p188 = scmp.eq.s32.totalorder %s33, 1
    %p189 = por %p187, %p188
    %p190 = scmp.ne.s32.totalorder %s181, %s182
    %p191 = scmp.eq.s32.totalorder %s33, 0
    %p192 = por %p190, %p191
    %p193 = scmp.ne.s32.totalorder %s181, %s182
    %p194 = scmp.eq.s32.totalorder %s34, 1
    %p195 = por %p193, %p194
    %p197 = scmp.ne.s32.totalorder %s182, %s196
    %p198 = scmp.eq.s32.totalorder %s34, 0
    %p199 = por %p197, %p198
    %s201 = sadd.s32 %s200, 1
    %p204 = scmp.eq.s32.totalorder %s28, 1
    %p205 = scmp.ne.s32.totalorder %s200, %s202
    %p206 = scmp.eq.s32.totalorder %s28, 0
    %p207 = por %p205, %p206
    %p208 = scmp.ne.s32.totalorder %s200, %s202
    %p209 = scmp.eq.s32.totalorder %s33, 1
    %p210 = por %p208, %p209
    %p211 = scmp.ne.s32.totalorder %s202, %s203
    %p212 = scmp.eq.s32.totalorder %s33, 0
    %p213 = por %p211, %p212
    %p214 = scmp.ne.s32.totalorder %s202, %s203
    %p215 = scmp.eq.s32.totalorder %s34, 1
    %p216 = por %p214, %p215
    %p218 = scmp.ne.s32.totalorder %s203, %s217
    %p219 = scmp.eq.s32.totalorder %s34, 0
    %p220 = por %p218, %p219
    %s222 = sadd.s32 %s221, 1
    %p225 = scmp.eq.s32.totalorder %s28, 1
    %p226 = scmp.ne.s32.totalorder %s221, %s223
    %p227 = scmp.eq.s32.totalorder %s28, 0
    %p228 = por %p226, %p227
    %p229 = scmp.ne.s32.totalorder %s221, %s223
    %p230 = scmp.eq.s32.totalorder %s33, 1
    %p231 = por %p229, %p230
    %p232 = scmp.ne.s32.totalorder %s223, %s224
    %p233 = scmp.eq.s32.totalorder %s33, 0
    %p234 = por %p232, %p233
    %p235 = scmp.ne.s32.totalorder %s223, %s224
    %p236 = scmp.eq.s32.totalorder %s34, 1
    %p237 = por %p235, %p236
    %p239 = scmp.ne.s32.totalorder %s224, %s238
    %p240 = scmp.eq.s32.totalorder %s34, 0
    %p241 = por %p239, %p240
    %s243 = sadd.s32 %s242, 1
    %p246 = scmp.eq.s32.totalorder %s28, 1
    %p247 = scmp.ne.s32.totalorder %s242, %s244
    %p248 = scmp.eq.s32.totalorder %s28, 0
    %p249 = por %p247, %p248
    %p250 = scmp.ne.s32.totalorder %s242, %s244
    %p251 = scmp.eq.s32.totalorder %s33, 1
    %p252 = por %p250, %p251
    %p253 = scmp.ne.s32.totalorder %s244, %s245
    %p254 = scmp.eq.s32.totalorder %s33, 0
    %p255 = por %p253, %p254
    %p256 = scmp.ne.s32.totalorder %s244, %s245
    %p257 = scmp.eq.s32.totalorder %s34, 1
    %p258 = por %p256, %p257
    %p260 = scmp.ne.s32.totalorder %s245, %s259
    %p261 = scmp.eq.s32.totalorder %s34, 0
    %p262 = por %p260, %p261
    %s264 = sadd.s32 %s263, 1
    %p267 = scmp.eq.s32.totalorder %s28, 1
    %p268 = scmp.ne.s32.totalorder %s263, %s265
    %p269 = scmp.eq.s32.totalorder %s28, 0
    %p270 = por %p268, %p269
    %p271 = scmp.ne.s32.totalorder %s263, %s265
    %p272 = scmp.eq.s32.totalorder %s33, 1
    %p273 = por %p271, %p272
    %p274 = scmp.ne.s32.totalorder %s265, %s266
    %p275 = scmp.eq.s32.totalorder %s33, 0
    %p276 = por %p274, %p275
    %p277 = scmp.ne.s32.totalorder %s265, %s266
    %p278 = scmp.eq.s32.totalorder %s34, 1
    %p279 = por %p277, %p278
    %p281 = scmp.ne.s32.totalorder %s266, %s280
    %p282 = scmp.eq.s32.totalorder %s34, 0
    %p283 = por %p281, %p282
    %s285 = sadd.s32 %s284, 1
    %p288 = scmp.eq.s32.totalorder %s28, 1
    %p289 = scmp.ne.s32.totalorder %s284, %s286
    %p290 = scmp.eq.s32.totalorder %s28, 0
    %p291 = por %p289, %p290
    %p292 = scmp.ne.s32.totalorder %s284, %s286
    %p293 = scmp.eq.s32.totalorder %s33, 1
    %p294 = por %p292, %p293
    %p295 = scmp.ne.s32.totalorder %s286, %s287
    %p296 = scmp.eq.s32.totalorder %s33, 0
    %p297 = por %p295, %p296
    %p298 = scmp.ne.s32.totalorder %s286, %s287
    %p299 = scmp.eq.s32.totalorder %s34, 1
    %p300 = por %p298, %p299
    %p302 = scmp.ne.s32.totalorder %s287, %s301
    %p303 = scmp.eq.s32.totalorder %s34, 0
    %p304 = por %p302, %p303
    %s305 = ssub.s32 %s35, %s47
    %p306 = scmp.eq.s32.totalorder %s305, 0
    %s308 = sadd.s32 %s307, 1
    %s309 = scalar_select %p306, %s307, %s308
    %p312 = pneg %p306
    %p313 = scmp.eq.s32.totalorder %s28, 1
    %p314 = por %p312, %p313
    %p315 = scmp.ne.s32.totalorder %s307, %s310
    %p316 = scmp.eq.s32.totalorder %s28, 0
    %p317 = por %p315, %p316
    %p318 = scmp.ne.s32.totalorder %s307, %s310
    %p319 = scmp.eq.s32.totalorder %s33, 1
    %p320 = por %p318, %p319
    %p321 = scmp.ne.s32.totalorder %s310, %s311
    %p322 = scmp.eq.s32.totalorder %s33, 0
    %p323 = por %p321, %p322
    %p324 = scmp.ne.s32.totalorder %s310, %s311
    %p325 = scmp.eq.s32.totalorder %s34, 1
    %p326 = por %p324, %p325
    %p328 = scmp.ne.s32.totalorder %s311, %s327
    %p329 = scmp.eq.s32.totalorder %s34, 0
    %p330 = por %p328, %p329
    %p331 = scmp.le.s32.totalorder 1, %s28
    %p332 = scmp.lt.s32.totalorder %s28, 3
    %p333 = pnand %p331, %p332
    %p334 = pneg %p333
    // Predicated region
    $region9: #{mesh_node_block.1} parent=5 // pred_check
      _
    $region10: #{mesh_node_block.1} parent=5 // pred_check_branch
      %336 = sbr.rel (%p333) target = $region12
    $region11: #{mesh_node_block.1} parent=5 // pred_region
      %s337 = ssub.s32 %s28, 1
      // Predicated region
      $region13: #{mesh_node_block.1} parent=11 // pred_check
        %p338 = pneg %p171
      $region14: #{mesh_node_block.1} parent=11 // pred_check_branch
        %340 = sbr.rel (%p338) target = $region16
      $region15: #{mesh_node_block.1} parent=11 // pred_region
        _
      $region16: #{mesh_node_block.1} parent=11 // pred_fallthru
        _
      // Predicated region
      $region17: #{mesh_node_block.1} parent=11 // pred_check
        %p341 = pneg %p192
      $region18: #{mesh_node_block.1} parent=11 // pred_check_branch
        %343 = sbr.rel (%p341) target = $region20
      $region19: #{mesh_node_block.1} parent=11 // pred_region
        _
      $region20: #{mesh_node_block.1} parent=11 // pred_fallthru
        _
      // Predicated region
      $region21: #{mesh_node_block.1} parent=11 // pred_check
        %p344 = pneg %p213
      $region22: #{mesh_node_block.1} parent=11 // pred_check_branch
        %346 = sbr.rel (%p344) target = $region24
      $region23: #{mesh_node_block.1} parent=11 // pred_region
        _
      $region24: #{mesh_node_block.1} parent=11 // pred_fallthru
        _
      // Predicated region
      $region25: #{mesh_node_block.1} parent=11 // pred_check
        %p347 = pneg %p234
      $region26: #{mesh_node_block.1} parent=11 // pred_check_branch
        %349 = sbr.rel (%p347) target = $region28
      $region27: #{mesh_node_block.1} parent=11 // pred_region
        _
      $region28: #{mesh_node_block.1} parent=11 // pred_fallthru
        _
      // Predicated region
      $region29: #{mesh_node_block.1} parent=11 // pred_check
        %p350 = pneg %p255
      $region30: #{mesh_node_block.1} parent=11 // pred_check_branch
        %352 = sbr.rel (%p350) target = $region32
      $region31: #{mesh_node_block.1} parent=11 // pred_region
        _
      $region32: #{mesh_node_block.1} parent=11 // pred_fallthru
        _
      // Predicated region
      $region33: #{mesh_node_block.1} parent=11 // pred_check
        %p353 = pneg %p276
      $region34: #{mesh_node_block.1} parent=11 // pred_check_branch
        %355 = sbr.rel (%p353) target = $region36
      $region35: #{mesh_node_block.1} parent=11 // pred_region
        _
      $region36: #{mesh_node_block.1} parent=11 // pred_fallthru
        _
      // Predicated region
      $region37: #{mesh_node_block.1} parent=11 // pred_check
        %p356 = pneg %p297
      $region38: #{mesh_node_block.1} parent=11 // pred_check_branch
        %358 = sbr.rel (%p356) target = $region40
      $region39: #{mesh_node_block.1} parent=11 // pred_region
        _
      $region40: #{mesh_node_block.1} parent=11 // pred_fallthru
        _
    $region12: #{mesh_node_block.1} parent=5 // pred_fallthru
      _
    %p359 = scmp.lt.s32.totalorder %s28, 2
    // Predicated region
    $region41: #{mesh_node_block.1} parent=5 // pred_check
      %p360 = pneg %p359
    $region42: #{mesh_node_block.1} parent=5 // pred_check_branch
      %362 = sbr.rel (%p360) target = $region44
    $region43: #{mesh_node_block.1} parent=5 // pred_region
      // Predicated region
      $region45: #{mesh_node_block.1} parent=43 // pred_check
        %p363 = pneg %p76
      $region46: #{mesh_node_block.1} parent=43 // pred_check_branch
        %365 = sbr.rel (%p363) target = $region48
      $region47: #{mesh_node_block.1} parent=43 // pred_region
        %s366 = sld [smem:[#allocation5 + %s35]]
        %s367 = ssub.s32 %s366, 1
        %p368 = scmp.gt.s32.totalorder %s367, 0
        %s369 = scalar_select %p368, %s367, 0
        %s370 = sld [smem:[#allocation4 + %s35]]
        %p371 = scmp.lt.s32.totalorder %s36, %s369
        %s372 = scalar_select %p371, %s36, %s369
        %s373 = sadd.s32 %s370, %s372
        %p374 = scmp.lt.s32.totalorder %s373, 0
        %s375 = scalar_select %p374, %s373, 0
        %s376 = scalar_lea.vmem %s2, %s375
        %s377 = sld [smem:[#allocation5 + %s35]]
        %s378 = ssub.s32 %s377, 1
        %p379 = scmp.gt.s32.totalorder %s378, 0
        %s380 = scalar_select %p379, %s378, 0
        %s381 = sld [smem:[#allocation4 + %s35]]
        %p382 = scmp.lt.s32.totalorder %s36, %s380
        %s383 = scalar_select %p382, %s36, %s380
        %s384 = sadd.s32 %s381, %s383
      $region48: #{mesh_node_block.1} parent=43 // pred_fallthru
        _
      // Predicated region
      $region49: #{mesh_node_block.1} parent=43 // pred_check
        %p385 = pneg %p118
      $region50: #{mesh_node_block.1} parent=43 // pred_check_branch
        %387 = sbr.rel (%p385) target = $region52
      $region51: #{mesh_node_block.1} parent=43 // pred_region
        %s388 = sld [smem:[#allocation5 + %s35]]
        %s389 = ssub.s32 %s388, 1
        %p390 = scmp.gt.s32.totalorder %s389, 0
        %s391 = scalar_select %p390, %s389, 0
        %s392 = sld [smem:[#allocation4 + %s35]]
        %p393 = scmp.lt.s32.totalorder %s36, %s391
        %s394 = scalar_select %p393, %s36, %s391
        %s395 = sadd.s32 %s392, %s394
        %s396 = smul.u32 16, %s395
        %p397 = scmp.lt.s32.totalorder %s396, 15
        %s398 = scalar_select %p397, %s396, 15
        %s399 = smul.addr %s398, 8
        %s400 = scalar_lea.vmem %s3, %s399
        %s401 = sld [smem:[#allocation5 + %s35]]
        %s402 = ssub.s32 %s401, 1
        %p403 = scmp.gt.s32.totalorder %s402, 0
        %s404 = scalar_select %p403, %s402, 0
        %s405 = sld [smem:[#allocation4 + %s35]]
        %p406 = scmp.lt.s32.totalorder %s36, %s404
        %s407 = scalar_select %p406, %s36, %s404
        %s408 = sadd.s32 %s405, %s407
        %s409 = smul.u32 16, %s408
      $region52: #{mesh_node_block.1} parent=43 // pred_fallthru
        _
      // Predicated region
      $region53: #{mesh_node_block.1} parent=43 // pred_check
        %p410 = pneg %p144
      $region54: #{mesh_node_block.1} parent=43 // pred_check_branch
        %412 = sbr.rel (%p410) target = $region56
      $region55: #{mesh_node_block.1} parent=43 // pred_region
        %s413 = smul.u32 4, %s35
        %p414 = scmp.lt.s32.totalorder %s413, 7
        %s415 = scalar_select %p414, %s413, 7
        %s416 = smul.addr %s415, 8
        %s417 = scalar_lea.vmem %s4, %s416
        %s418 = smul.u32 4, %s35
      $region56: #{mesh_node_block.1} parent=43 // pred_fallthru
        _
    $region44: #{mesh_node_block.1} parent=5 // pred_fallthru
      _
    %p419 = scmp.le.s32.totalorder 1, %s28
    %p420 = scmp.lt.s32.totalorder %s28, 3
    %p421 = pnand %p419, %p420
    %p422 = pneg %p421
    // Predicated region
    $region57: #{mesh_node_block.1} parent=5 // pred_check
      _
    $region58: #{mesh_node_block.1} parent=5 // pred_check_branch
      %424 = sbr.rel (%p421) target = $region60
    $region59: #{mesh_node_block.1} parent=5 // pred_region
      %s425 = ssub.s32 %s28, 1
      %s426 = sld [smem:[#allocation5 + %s37]]
      %s427 = ssub.s32 %s426, 1
      %p428 = scmp.gt.s32.totalorder %s427, 0
      %s429 = scalar_select %p428, %s427, 0
      %s430 = sld [smem:[#allocation4 + %s37]]
      %p431 = scmp.lt.s32.totalorder %s38, %s429
      %s432 = scalar_select %p431, %s38, %s429
      %s433 = sadd.s32 %s430, %s432
      %p434 = scmp.lt.s32.totalorder %s433, 0
      %s435 = scalar_select %p434, %s433, 0
      %s436 = scalar_lea.vmem %s2, %s435
      %p437 = pneg %p82
      %p438 = pneg %p79
      %s439 = sld [smem:[#allocation5 + %s37]]
      %s440 = ssub.s32 %s439, 1
      %p441 = scmp.gt.s32.totalorder %s440, 0
      %s442 = scalar_select %p441, %s440, 0
      %s443 = sld [smem:[#allocation4 + %s37]]
      %p444 = scmp.lt.s32.totalorder %s38, %s442
      %s445 = scalar_select %p444, %s38, %s442
      %s446 = sadd.s32 %s443, %s445
      %s447 = smul.u32 16, %s446
      %p448 = scmp.lt.s32.totalorder %s447, 15
      %s449 = scalar_select %p448, %s447, 15
      %s450 = smul.addr %s449, 8
      %s451 = scalar_lea.vmem %s3, %s450
      %p452 = pneg %p124
      %p453 = pneg %p121
      %s454 = smul.u32 4, %s37
      %p455 = scmp.lt.s32.totalorder %s454, 7
      %s456 = scalar_select %p455, %s454, 7
      %s457 = smul.addr %s456, 8
      %s458 = scalar_lea.vmem %s4, %s457
      %p459 = pneg %p150
      %p460 = pneg %p147
      %p461 = pneg %p171
      %p462 = pneg %p168
      %p463 = pneg %p192
      %p464 = pneg %p189
      %p465 = pneg %p213
      %p466 = pneg %p210
      %p467 = pneg %p234
      %p468 = pneg %p231
      %p469 = pneg %p255
      %p470 = pneg %p252
      %p471 = pneg %p276
      %p472 = pneg %p273
      %p473 = pneg %p297
      %p474 = pneg %p294
      %p475 = pneg %p323
      %p476 = pneg %p320
      %s477 = smul.u32 4, %s37
      %p478 = scmp.lt.s32.totalorder %s477, 7
      %s479 = scalar_select %p478, %s477, 7
      %s480 = smul.addr %s479, 8
      %s481 = scalar_lea.vmem %s12, %s480
      %s482 = sld [smem:[#allocation5 + %s37]]
      %s483 = ssub.s32 %s482, 1
      %p484 = scmp.gt.s32.totalorder %s483, 0
      %s485 = scalar_select %p484, %s483, 0
      %s486 = sld [smem:[#allocation4 + %s37]]
      %p487 = scmp.lt.s32.totalorder %s38, %s485
      %s488 = scalar_select %p487, %s38, %s485
      %s489 = sadd.s32 %s486, %s488
      %p490 = scmp.lt.s32.totalorder %s489, 0
      %s491 = scalar_select %p490, %s489, 0
      %s492 = scalar_lea.vmem %s2, %s491
      %s493 = sld [smem:[#allocation5 + %s37]]
      %s494 = ssub.s32 %s493, 1
      %p495 = scmp.gt.s32.totalorder %s494, 0
      %s496 = scalar_select %p495, %s494, 0
      %s497 = sld [smem:[#allocation4 + %s37]]
      %p498 = scmp.lt.s32.totalorder %s38, %s496
      %s499 = scalar_select %p498, %s38, %s496
      %s500 = sadd.s32 %s497, %s499
      %s501 = sld [smem:[#allocation5 + %s37]]
      %s502 = ssub.s32 %s501, 1
      %p503 = scmp.gt.s32.totalorder %s502, 0
      %s504 = scalar_select %p503, %s502, 0
      %s505 = sld [smem:[#allocation4 + %s37]]
      %p506 = scmp.lt.s32.totalorder %s38, %s504
      %s507 = scalar_select %p506, %s38, %s504
      %s508 = sadd.s32 %s505, %s507
      %s509 = smul.u32 16, %s508
      %p510 = scmp.lt.s32.totalorder %s509, 15
      %s511 = scalar_select %p510, %s509, 15
      %s512 = smul.addr %s511, 8
      %s513 = scalar_lea.vmem %s3, %s512
      %s514 = sld [smem:[#allocation5 + %s37]]
      %s515 = ssub.s32 %s514, 1
      %p516 = scmp.gt.s32.totalorder %s515, 0
      %s517 = scalar_select %p516, %s515, 0
      %s518 = sld [smem:[#allocation4 + %s37]]
      %p519 = scmp.lt.s32.totalorder %s38, %s517
      %s520 = scalar_select %p519, %s38, %s517
      %s521 = sadd.s32 %s518, %s520
      %s522 = smul.u32 16, %s521
      %s523 = smul.u32 4, %s37
      %p524 = scmp.lt.s32.totalorder %s523, 7
      %s525 = scalar_select %p524, %s523, 7
      %s526 = smul.addr %s525, 8
      %s527 = scalar_lea.vmem %s4, %s526
      %s528 = smul.u32 4, %s37
      %s529 = smul.u32 4, %s37
      %p530 = scmp.lt.s32.totalorder %s529, 7
      %s531 = scalar_select %p530, %s529, 7
      %s532 = smul.addr %s531, 8
      %s533 = scalar_lea.vmem %s12, %s532
      %s534 = smul.u32 4, %s37
      %p535 = scmp.eq.s32.totalorder %s38, 0
      // Predicated region
      $region61: #{mesh_node_block.1} parent=59 // pred_check
        %p536 = pneg %p535
      $region62: #{mesh_node_block.1} parent=59 // pred_check_branch
        %538 = sbr.rel (%p536) target = $region64
      $region63: #{mesh_node_block.1} parent=59 // pred_region
        %539 = vst [vmem:[#allocation2] sm:$0xff] 0.0
        %540 = vst [vmem:[#allocation2 + $0x8] sm:$0xff] 0.0
        %541 = vst [vmem:[#allocation2 + $0x10] sm:$0xff] 0.0
        %542 = vst [vmem:[#allocation2 + $0x18] sm:$0xff] 0.0
      $region64: #{mesh_node_block.1} parent=59 // pred_fallthru
        _
      %s543 = sld [smem:[#allocation5 + %s37]]
      %p544 = scmp.lt.s32.totalorder %s38, %s543
      // Predicated region
      $region65: #{mesh_node_block.1} parent=59 // pred_check
        %p545 = pneg %p544
      $region66: #{mesh_node_block.1} parent=59 // pred_check_branch
        %547 = sbr.rel (%p545) target = $region68
      $region67: #{mesh_node_block.1} parent=59 // pred_region
        %v548 = vld [vmem:[%s513] sm:$0xff]
        %v549 = vld [vmem:[%s513 + $0x8] sm:$0xff]
        %v550 = vld [vmem:[%s513 + $0x10] sm:$0xff]
        %v551 = vld [vmem:[%s513 + $0x18] sm:$0xff]
        %v552 = vld [vmem:[%s513 + $0x20] sm:$0xff]
        %v553 = vld [vmem:[%s513 + $0x28] sm:$0xff]
        %v554 = vld [vmem:[%s513 + $0x30] sm:$0xff]
        %v555 = vld [vmem:[%s513 + $0x38] sm:$0xff]
        %v556 = vld [vmem:[%s513 + $0x40] sm:$0xff]
        %v557 = vld [vmem:[%s513 + $0x48] sm:$0xff]
        %v558 = vld [vmem:[%s513 + $0x50] sm:$0xff]
        %v559 = vld [vmem:[%s513 + $0x58] sm:$0xff]
        %v560 = vld [vmem:[%s513 + $0x60] sm:$0xff]
        %v561 = vld [vmem:[%s513 + $0x68] sm:$0xff]
        %v562 = vld [vmem:[%s513 + $0x70] sm:$0xff]
        %v563 = vld [vmem:[%s513 + $0x78] sm:$0xff]
        %v564 = vld [vmem:[%s492] sm:$0x1]
        %s565 = smul.u32 %s37, 32
        %v566 = vstv %s565
        %v567 = vsub.s32 %v564, %v566
        %v568 = vlaneseq
        %v569 = vshrl.u32 %v568, 7
        %v570 = vadd.s32 %v569, 8
        %v571 = vadd.s32 %v569, 16
        %v572 = vadd.s32 %v569, 24
        %v573 = vlaneseq
        %v574 = vshrl.u32 %v573, 7
        %v575 = vsub.s32 0, %v574
        %v576 = vrot.slane %v567, %v575
        %vm577 = vcmp.eq.s32.totalorder %v569, %v576
        %vm578 = vcmp.eq.s32.totalorder %v570, %v576
        %vm579 = vcmp.eq.s32.totalorder %v571, %v576
        %vm580 = vcmp.eq.s32.totalorder %v572, %v576
        %v581 = vsel %vm577, 1, 0
        %v582 = vsel %vm578, 1, 0
        %v583 = vsel %vm579, 1, 0
        %v584 = vsel %vm580, 1, 0
        %v585 = vcvt.s32.f32 %v581
        %v586 = vcvt.s32.f32 %v582
        %v587 = vcvt.s32.f32 %v583
        %v588 = vcvt.s32.f32 %v584
        %v589 = vld [vmem:[#allocation2] sm:$0xff]
        %v590 = vld [vmem:[#allocation2 + $0x8] sm:$0xff]
        %v591 = vld [vmem:[#allocation2 + $0x10] sm:$0xff]
        %v592 = vld [vmem:[#allocation2 + $0x18] sm:$0xff]
        %593 = vmatprep.subr.mxu0 0.0
        %594 = vmatpush1.msra.mxu0 %v548
        %595 = vmatprep.subr.mxu0 0.0
        %596 = vmatpush1.msra.mxu0 %v549
        %597 = vmatprep.subr.mxu0 0.0
        %598 = vmatpush1.msra.mxu0 %v550
        %599 = vmatprep.subr.mxu0 0.0
        %600 = vmatpush1.msra.mxu0 %v551
        %601 = vmatprep.subr.mxu0 0.0
        %602 = vmatpush1.msra.mxu0 %v552
        %603 = vmatprep.subr.mxu0 0.0
        %604 = vmatpush1.msra.mxu0 %v553
        %605 = vmatprep.subr.mxu0 0.0
        %606 = vmatpush1.msra.mxu0 %v554
        %607 = vmatprep.subr.mxu0 0.0
        %608 = vmatpush1.msra.mxu0 %v555
        %609 = vmatprep.subr.mxu0 0.0
        %610 = vmatpush1.msra.mxu0 %v556
        %611 = vmatprep.subr.mxu0 0.0
        %612 = vmatpush1.msra.mxu0 %v557
        %613 = vmatprep.subr.mxu0 0.0
        %614 = vmatpush1.msra.mxu0 %v558
        %615 = vmatprep.subr.mxu0 0.0
        %616 = vmatpush1.msra.mxu0 %v559
        %617 = vmatprep.subr.mxu0 0.0
        %618 = vmatpush1.msra.mxu0 %v560
        %619 = vmatprep.subr.mxu0 0.0
        %620 = vmatpush1.msra.mxu0 %v561
        %621 = vmatprep.subr.mxu0 0.0
        %622 = vmatpush1.msra.mxu0 %v562
        %623 = vmatprep.subr.mxu0 0.0
        %624 = vmatpush1.msra.mxu0 %v563
        %625 = vmatprep.subr.mxu0 0.0
        %626 = vmatpush1.msra.mxu0 0.0
        %627 = vmatprep.subr.mxu0 0.0
        %628 = vmatpush1.msra.mxu0 0.0
        %629 = vmatprep.subr.mxu0 0.0
        %630 = vmatpush1.msra.mxu0 0.0
        %631 = vmatprep.subr.mxu0 0.0
        %632 = vmatpush1.msra.mxu0 0.0
        %633 = vmatprep.subr.mxu0 0.0
        %634 = vmatpush1.msra.mxu0 0.0
        %635 = vmatprep.subr.mxu0 0.0
        %636 = vmatpush1.msra.mxu0 0.0
        %637 = vmatprep.subr.mxu0 0.0
        %638 = vmatpush1.msra.mxu0 0.0
        %639 = vmatprep.subr.mxu0 0.0
        %640 = vmatpush1.msra.mxu0 0.0
        %641 = vmatprep.subr.mxu0 0.0
        %642 = vmatpush1.msra.mxu0 0.0
        %643 = vmatprep.subr.mxu0 0.0
        %644 = vmatpush1.msra.mxu0 0.0
        %645 = vmatprep.subr.mxu0 0.0
        %646 = vmatpush1.msra.mxu0 0.0
        %647 = vmatprep.subr.mxu0 0.0
        %648 = vmatpush1.msra.mxu0 0.0
        %649 = vmatprep.subr.mxu0 0.0
        %650 = vmatpush1.msra.mxu0 0.0
        %651 = vmatprep.subr.mxu0 0.0
        %652 = vmatpush1.msra.mxu0 0.0
        %653 = vmatprep.subr.mxu0 0.0
        %654 = vmatpush1.msra.mxu0 0.0
        %655 = vmatprep.subr.mxu0 0.0
        %656 = vmatpush1.msra.mxu0 0.0
        %657 = vmatprep.mubr.f32.mxu0 0.0
        %658 = vmatmul.mubr.f32.gmra.mrb[0].mxu0 %v585
        %v659 = vpop.f32.mrb[0].mxu0
        %v660 = vadd.f32 0.0, %v659
        %v661 = vpop.f32.mrb[0].mxu0
        %662 = vmatprep.mubr.f32.mxu0 0.0
        %663 = vmatmul.mubr.f32.gmra.mrb[0].mxu0 %v586
        %v664 = vpop.f32.mrb[0].mxu0
        %v665 = vadd.f32 0.0, %v664
        %v666 = vpop.f32.mrb[0].mxu0
        %667 = vmatprep.mubr.f32.mxu0 0.0
        %668 = vmatmul.mubr.f32.gmra.mrb[0].mxu0 %v587
        %v669 = vpop.f32.mrb[0].mxu0
        %v670 = vadd.f32 0.0, %v669
        %v671 = vpop.f32.mrb[0].mxu0
        %672 = vmatprep.mubr.f32.mxu0 0.0
        %673 = vmatmul.mubr.f32.gmra.mrb[0].mxu0 %v588
        %v674 = vpop.f32.mrb[0].mxu0
        %v675 = vadd.f32 0.0, %v674
        %v676 = vpop.f32.mrb[0].mxu0
        %677 = vdwg.mxu0
        %v678 = vadd.f32 %v589, %v660
        %v679 = vadd.f32 %v590, %v665
        %v680 = vadd.f32 %v591, %v670
        %v681 = vadd.f32 %v592, %v675
        %682 = vst [vmem:[#allocation2] sm:$0xff] %v678
        %683 = vst [vmem:[#allocation2 + $0x8] sm:$0xff] %v679
        %684 = vst [vmem:[#allocation2 + $0x10] sm:$0xff] %v680
        %685 = vst [vmem:[#allocation2 + $0x18] sm:$0xff] %v681
      $region68: #{mesh_node_block.1} parent=59 // pred_fallthru
        _
      // Predicated region
      $region69: #{mesh_node_block.1} parent=59 // pred_check
        %p686 = pneg %p535
      $region70: #{mesh_node_block.1} parent=59 // pred_check_branch
        %688 = sbr.rel (%p686) target = $region72
      $region71: #{mesh_node_block.1} parent=59 // pred_region
        %v689 = vld [vmem:[%s527] sm:$0xff]
        %v690 = vld [vmem:[%s527 + $0x8] sm:$0xff]
        %v691 = vld [vmem:[%s527 + $0x10] sm:$0xff]
        %v692 = vld [vmem:[%s527 + $0x18] sm:$0xff]
        %v693 = vld [vmem:[#allocation2] sm:$0xff]
        %v694 = vld [vmem:[#allocation2 + $0x8] sm:$0xff]
        %v695 = vld [vmem:[#allocation2 + $0x10] sm:$0xff]
        %v696 = vld [vmem:[#allocation2 + $0x18] sm:$0xff]
        %v697 = vld [vmem:[%s5] sm:$0xff]
        %v698 = vld [vmem:[%s5 + $0x8] sm:$0xff]
        %v699 = vld [vmem:[%s5 + $0x10] sm:$0xff]
        %v700 = vld [vmem:[%s5 + $0x18] sm:$0xff]
        %v701 = vld [vmem:[%s5 + $0x20] sm:$0xff]
        %v702 = vld [vmem:[%s5 + $0x28] sm:$0xff]
        %v703 = vld [vmem:[%s5 + $0x30] sm:$0xff]
        %v704 = vld [vmem:[%s5 + $0x38] sm:$0xff]
        %v705 = vld [vmem:[%s5 + $0x40] sm:$0xff]
        %v706 = vld [vmem:[%s5 + $0x48] sm:$0xff]
        %v707 = vld [vmem:[%s5 + $0x50] sm:$0xff]
        %v708 = vld [vmem:[%s5 + $0x58] sm:$0xff]
        %v709 = vld [vmem:[%s5 + $0x60] sm:$0xff]
        %v710 = vld [vmem:[%s5 + $0x68] sm:$0xff]
        %v711 = vld [vmem:[%s5 + $0x70] sm:$0xff]
        %v712 = vld [vmem:[%s5 + $0x78] sm:$0xff]
        %v713 = vld [vmem:[%s6] sm:$0xff]
        %v714 = vld [vmem:[%s6 + $0x8] sm:$0xff]
        %v715 = vld [vmem:[%s6 + $0x10] sm:$0xff]
        %v716 = vld [vmem:[%s6 + $0x18] sm:$0xff]
        %v717 = vld [vmem:[%s6 + $0x20] sm:$0xff]
        %v718 = vld [vmem:[%s6 + $0x28] sm:$0xff]
        %v719 = vld [vmem:[%s6 + $0x30] sm:$0xff]
        %v720 = vld [vmem:[%s6 + $0x38] sm:$0xff]
        %v721 = vld [vmem:[%s6 + $0x40] sm:$0xff]
        %v722 = vld [vmem:[%s6 + $0x48] sm:$0xff]
        %v723 = vld [vmem:[%s6 + $0x50] sm:$0xff]
        %v724 = vld [vmem:[%s6 + $0x58] sm:$0xff]
        %v725 = vld [vmem:[%s6 + $0x60] sm:$0xff]
        %v726 = vld [vmem:[%s6 + $0x68] sm:$0xff]
        %v727 = vld [vmem:[%s6 + $0x70] sm:$0xff]
        %v728 = vld [vmem:[%s6 + $0x78] sm:$0xff]
        %729 = vmatprep.subr.mxu0 0.0
        %730 = vmatpush1.msra.mxu0 %v713
        %731 = vmatprep.subr.mxu0 0.0
        %732 = vmatpush1.msra.mxu0 %v714
        %733 = vmatprep.subr.mxu0 0.0
        %734 = vmatpush1.msra.mxu0 %v715
        %735 = vmatprep.subr.mxu0 0.0
        %736 = vmatpush1.msra.mxu0 %v716
        %737 = vmatprep.subr.mxu0 0.0
        %738 = vmatpush1.msra.mxu0 %v717
        %739 = vmatprep.subr.mxu0 0.0
        %740 = vmatpush1.msra.mxu0 %v718
        %741 = vmatprep.subr.mxu0 0.0
        %742 = vmatpush1.msra.mxu0 %v719
        %743 = vmatprep.subr.mxu0 0.0
        %744 = vmatpush1.msra.mxu0 %v720
        %745 = vmatprep.subr.mxu0 0.0
        %746 = vmatpush1.msra.mxu0 %v721
        %747 = vmatprep.subr.mxu0 0.0
        %748 = vmatpush1.msra.mxu0 %v722
        %749 = vmatprep.subr.mxu0 0.0
        %750 = vmatpush1.msra.mxu0 %v723
        %751 = vmatprep.subr.mxu0 0.0
        %752 = vmatpush1.msra.mxu0 %v724
        %753 = vmatprep.subr.mxu0 0.0
        %754 = vmatpush1.msra.mxu0 %v725
        %755 = vmatprep.subr.mxu0 0.0
        %756 = vmatpush1.msra.mxu0 %v726
        %757 = vmatprep.subr.mxu0 0.0
        %758 = vmatpush1.msra.mxu0 %v727
        %759 = vmatprep.subr.mxu0 0.0
        %760 = vmatpush1.msra.mxu0 %v728
        %761 = vmatprep.subr.mxu0 0.0
        %762 = vmatpush1.msra.mxu0 0.0
        %763 = vmatprep.subr.mxu0 0.0
        %764 = vmatpush1.msra.mxu0 0.0
        %765 = vmatprep.subr.mxu0 0.0
        %766 = vmatpush1.msra.mxu0 0.0
        %767 = vmatprep.subr.mxu0 0.0
        %768 = vmatpush1.msra.mxu0 0.0
        %769 = vmatprep.subr.mxu0 0.0
        %770 = vmatpush1.msra.mxu0 0.0
        %771 = vmatprep.subr.mxu0 0.0
        %772 = vmatpush1.msra.mxu0 0.0
        %773 = vmatprep.subr.mxu0 0.0
        %774 = vmatpush1.msra.mxu0 0.0
        %775 = vmatprep.subr.mxu0 0.0
        %776 = vmatpush1.msra.mxu0 0.0
        %777 = vmatprep.subr.mxu0 0.0
        %778 = vmatpush1.msra.mxu0 0.0
        %779 = vmatprep.subr.mxu0 0.0
        %780 = vmatpush1.msra.mxu0 0.0
        %781 = vmatprep.subr.mxu0 0.0
        %782 = vmatpush1.msra.mxu0 0.0
        %783 = vmatprep.subr.mxu0 0.0
        %784 = vmatpush1.msra.mxu0 0.0
        %785 = vmatprep.subr.mxu0 0.0
        %786 = vmatpush1.msra.mxu0 0.0
        %787 = vmatprep.subr.mxu0 0.0
        %788 = vmatpush1.msra.mxu0 0.0
        %789 = vmatprep.subr.mxu0 0.0
        %790 = vmatpush1.msra.mxu0 0.0
        %791 = vmatprep.subr.mxu0 0.0
        %792 = vmatpush1.msra.mxu0 0.0
        %793 = vmatprep.mubr.f32.mxu0 0.0
        %794 = vmatmul.mubr.f32.gmra.mrb[0].mxu0 %v689
        %v795 = vpop.f32.mrb[0].mxu0
        %v796 = vadd.f32 0.0, %v795
        %v797 = vpop.f32.mrb[0].mxu0
        %798 = vmatprep.mubr.f32.mxu0 0.0
        %799 = vmatmul.mubr.f32.gmra.mrb[0].mxu0 %v690
        %v800 = vpop.f32.mrb[0].mxu0
        %v801 = vadd.f32 0.0, %v800
        %v802 = vpop.f32.mrb[0].mxu0
        %803 = vmatprep.mubr.f32.mxu0 0.0
        %804 = vmatmul.mubr.f32.gmra.mrb[0].mxu0 %v691
        %v805 = vpop.f32.mrb[0].mxu0
        %v806 = vadd.f32 0.0, %v805
        %v807 = vpop.f32.mrb[0].mxu0
        %808 = vmatprep.mubr.f32.mxu0 0.0
        %809 = vmatmul.mubr.f32.gmra.mrb[0].mxu0 %v692
        %v810 = vpop.f32.mrb[0].mxu0
        %v811 = vadd.f32 0.0, %v810
        %v812 = vpop.f32.mrb[0].mxu0
        %813 = vdwg.mxu0
        %814 = vmatprep.subr.mxu0 0.0
        %815 = vmatpush1.msra.mxu0 %v697
        %816 = vmatprep.subr.mxu0 0.0
        %817 = vmatpush1.msra.mxu0 %v698
        %818 = vmatprep.subr.mxu0 0.0
        %819 = vmatpush1.msra.mxu0 %v699
        %820 = vmatprep.subr.mxu0 0.0
        %821 = vmatpush1.msra.mxu0 %v700
        %822 = vmatprep.subr.mxu0 0.0
        %823 = vmatpush1.msra.mxu0 %v701
        %824 = vmatprep.subr.mxu0 0.0
        %825 = vmatpush1.msra.mxu0 %v702
        %826 = vmatprep.subr.mxu0 0.0
        %827 = vmatpush1.msra.mxu0 %v703
        %828 = vmatprep.subr.mxu0 0.0
        %829 = vmatpush1.msra.mxu0 %v704
        %830 = vmatprep.subr.mxu0 0.0
        %831 = vmatpush1.msra.mxu0 %v705
        %832 = vmatprep.subr.mxu0 0.0
        %833 = vmatpush1.msra.mxu0 %v706
        %834 = vmatprep.subr.mxu0 0.0
        %835 = vmatpush1.msra.mxu0 %v707
        %836 = vmatprep.subr.mxu0 0.0
        %837 = vmatpush1.msra.mxu0 %v708
        %838 = vmatprep.subr.mxu0 0.0
        %839 = vmatpush1.msra.mxu0 %v709
        %840 = vmatprep.subr.mxu0 0.0
        %841 = vmatpush1.msra.mxu0 %v710
        %842 = vmatprep.subr.mxu0 0.0
        %843 = vmatpush1.msra.mxu0 %v711
        %844 = vmatprep.subr.mxu0 0.0
        %845 = vmatpush1.msra.mxu0 %v712
        %846 = vmatprep.subr.mxu0 0.0
        %847 = vmatpush1.msra.mxu0 0.0
        %848 = vmatprep.subr.mxu0 0.0
        %849 = vmatpush1.msra.mxu0 0.0
        %850 = vmatprep.subr.mxu0 0.0
        %851 = vmatpush1.msra.mxu0 0.0
        %852 = vmatprep.subr.mxu0 0.0
        %853 = vmatpush1.msra.mxu0 0.0
        %854 = vmatprep.subr.mxu0 0.0
        %855 = vmatpush1.msra.mxu0 0.0
        %856 = vmatprep.subr.mxu0 0.0
        %857 = vmatpush1.msra.mxu0 0.0
        %858 = vmatprep.subr.mxu0 0.0
        %859 = vmatpush1.msra.mxu0 0.0
        %860 = vmatprep.subr.mxu0 0.0
        %861 = vmatpush1.msra.mxu0 0.0
        %862 = vmatprep.subr.mxu0 0.0
        %863 = vmatpush1.msra.mxu0 0.0
        %864 = vmatprep.subr.mxu0 0.0
        %865 = vmatpush1.msra.mxu0 0.0
        %866 = vmatprep.subr.mxu0 0.0
        %867 = vmatpush1.msra.mxu0 0.0
        %868 = vmatprep.subr.mxu0 0.0
        %869 = vmatpush1.msra.mxu0 0.0
        %870 = vmatprep.subr.mxu0 0.0
        %871 = vmatpush1.msra.mxu0 0.0
        %872 = vmatprep.subr.mxu0 0.0
        %873 = vmatpush1.msra.mxu0 0.0
        %874 = vmatprep.subr.mxu0 0.0
        %875 = vmatpush1.msra.mxu0 0.0
        %876 = vmatprep.subr.mxu0 0.0
        %877 = vmatpush1.msra.mxu0 0.0
        %878 = vmatprep.mubr.f32.mxu0 0.0
        %879 = vmatmul.mubr.f32.gmra.mrb[0].mxu0 %v693
        %v880 = vpop.f32.mrb[0].mxu0
        %v881 = vadd.f32 %v796, %v880
        %v882 = vpop.f32.mrb[0].mxu0
        %883 = vmatprep.mubr.f32.mxu0 0.0
        %884 = vmatmul.mubr.f32.gmra.mrb[0].mxu0 %v694
        %v885 = vpop.f32.mrb[0].mxu0
        %v886 = vadd.f32 %v801, %v885
        %v887 = vpop.f32.mrb[0].mxu0
        %888 = vmatprep.mubr.f32.mxu0 0.0
        %889 = vmatmul.mubr.f32.gmra.mrb[0].mxu0 %v695
        %v890 = vpop.f32.mrb[0].mxu0
        %v891 = vadd.f32 %v806, %v890
        %v892 = vpop.f32.mrb[0].mxu0
        %893 = vmatprep.mubr.f32.mxu0 0.0
        %894 = vmatmul.mubr.f32.gmra.mrb[0].mxu0 %v696
        %v895 = vpop.f32.mrb[0].mxu0
        %v896 = vadd.f32 %v811, %v895
        %v897 = vpop.f32.mrb[0].mxu0
        %898 = vdwg.mxu0
        %v899 = vld [vmem:[%s7] sm:$0x1]
        %v901 = vlaneseq
        %v902 = vshrl.u32 %v901, 7
        %v903 = vsub.s32 0, %v902
        %v904 = vrot.slane %v899, %v903
        %v906 = vadd.f32 %v881, %v904
        %v907 = vadd.f32 %v886, %v904
        %v908 = vadd.f32 %v891, %v904
        %v909 = vadd.f32 %v896, %v904
        %v910 = vxor.u32 %v906, 2147483648
        %v911 = vxor.u32 %v907, 2147483648
        %v912 = vxor.u32 %v908, 2147483648
        %v913 = vxor.u32 %v909, 2147483648
        %v914 = vmul.f32 %v910, 1.442695
        %v915 = vpow.pop %v914
        %v916 = vmul.f32 %v911, 1.442695
        %v917 = vpow.pop %v916
        %v918 = vmul.f32 %v912, 1.442695
        %v919 = vpow.pop %v918
        %v920 = vmul.f32 %v913, 1.442695
        %v921 = vpow.pop %v920
        %v922 = vadd.f32 %v915, 1.0
        %v923 = vadd.f32 %v917, 1.0
        %v924 = vadd.f32 %v919, 1.0
        %v925 = vadd.f32 %v921, 1.0
        %v926 = vrcp.pop %v922
        %v927 = vmul.f32 1.0, %v926
        %v928 = vrcp.pop %v923
        %v929 = vmul.f32 1.0, %v928
        %v930 = vrcp.pop %v924
        %v931 = vmul.f32 1.0, %v930
        %v932 = vrcp.pop %v925
        %v933 = vmul.f32 1.0, %v932
        %v934 = vmul.f32 %v906, %v927
        %v935 = vmul.f32 %v907, %v929
        %v936 = vmul.f32 %v908, %v931
        %v937 = vmul.f32 %v909, %v933
        %v938 = vld [vmem:[%s8] sm:$0xff]
        %v939 = vld [vmem:[%s8 + $0x8] sm:$0xff]
        %v940 = vld [vmem:[%s8 + $0x10] sm:$0xff]
        %v941 = vld [vmem:[%s8 + $0x18] sm:$0xff]
        %v942 = vld [vmem:[%s8 + $0x20] sm:$0xff]
        %v943 = vld [vmem:[%s8 + $0x28] sm:$0xff]
        %v944 = vld [vmem:[%s8 + $0x30] sm:$0xff]
        %v945 = vld [vmem:[%s8 + $0x38] sm:$0xff]
        %v946 = vld [vmem:[%s8 + $0x40] sm:$0xff]
        %v947 = vld [vmem:[%s8 + $0x48] sm:$0xff]
        %v948 = vld [vmem:[%s8 + $0x50] sm:$0xff]
        %v949 = vld [vmem:[%s8 + $0x58] sm:$0xff]
        %v950 = vld [vmem:[%s8 + $0x60] sm:$0xff]
        %v951 = vld [vmem:[%s8 + $0x68] sm:$0xff]
        %v952 = vld [vmem:[%s8 + $0x70] sm:$0xff]
        %v953 = vld [vmem:[%s8 + $0x78] sm:$0xff]
        %v954 = vld [vmem:[%s9] sm:$0x1]
        %v956 = vlaneseq
        %v957 = vshrl.u32 %v956, 7
        %v958 = vsub.s32 0, %v957
        %v959 = vrot.slane %v954, %v958
        %961 = vmatprep.subr.mxu0 0.0
        %962 = vmatpush1.msra.mxu0 %v938
        %963 = vmatprep.subr.mxu0 0.0
        %964 = vmatpush1.msra.mxu0 %v939
        %965 = vmatprep.subr.mxu0 0.0
        %966 = vmatpush1.msra.mxu0 %v940
        %967 = vmatprep.subr.mxu0 0.0
        %968 = vmatpush1.msra.mxu0 %v941
        %969 = vmatprep.subr.mxu0 0.0
        %970 = vmatpush1.msra.mxu0 %v942
        %971 = vmatprep.subr.mxu0 0.0
        %972 = vmatpush1.msra.mxu0 %v943
        %973 = vmatprep.subr.mxu0 0.0
        %974 = vmatpush1.msra.mxu0 %v944
        %975 = vmatprep.subr.mxu0 0.0
        %976 = vmatpush1.msra.mxu0 %v945
        %977 = vmatprep.subr.mxu0 0.0
        %978 = vmatpush1.msra.mxu0 %v946
        %979 = vmatprep.subr.mxu0 0.0
        %980 = vmatpush1.msra.mxu0 %v947
        %981 = vmatprep.subr.mxu0 0.0
        %982 = vmatpush1.msra.mxu0 %v948
        %983 = vmatprep.subr.mxu0 0.0
        %984 = vmatpush1.msra.mxu0 %v949
        %985 = vmatprep.subr.mxu0 0.0
        %986 = vmatpush1.msra.mxu0 %v950
        %987 = vmatprep.subr.mxu0 0.0
        %988 = vmatpush1.msra.mxu0 %v951
        %989 = vmatprep.subr.mxu0 0.0
        %990 = vmatpush1.msra.mxu0 %v952
        %991 = vmatprep.subr.mxu0 0.0
        %992 = vmatpush1.msra.mxu0 %v953
        %993 = vmatprep.subr.mxu0 0.0
        %994 = vmatpush1.msra.mxu0 0.0
        %995 = vmatprep.subr.mxu0 0.0
        %996 = vmatpush1.msra.mxu0 0.0
        %997 = vmatprep.subr.mxu0 0.0
        %998 = vmatpush1.msra.mxu0 0.0
        %999 = vmatprep.subr.mxu0 0.0
        %1000 = vmatpush1.msra.mxu0 0.0
        %1001 = vmatprep.subr.mxu0 0.0
        %1002 = vmatpush1.msra.mxu0 0.0
        %1003 = vmatprep.subr.mxu0 0.0
        %1004 = vmatpush1.msra.mxu0 0.0
        %1005 = vmatprep.subr.mxu0 0.0
        %1006 = vmatpush1.msra.mxu0 0.0
        %1007 = vmatprep.subr.mxu0 0.0
        %1008 = vmatpush1.msra.mxu0 0.0
        %1009 = vmatprep.subr.mxu0 0.0
        %1010 = vmatpush1.msra.mxu0 0.0
        %1011 = vmatprep.subr.mxu0 0.0
        %1012 = vmatpush1.msra.mxu0 0.0
        %1013 = vmatprep.subr.mxu0 0.0
        %1014 = vmatpush1.msra.mxu0 0.0
        %1015 = vmatprep.subr.mxu0 0.0
        %1016 = vmatpush1.msra.mxu0 0.0
        %1017 = vmatprep.subr.mxu0 0.0
        %1018 = vmatpush1.msra.mxu0 0.0
        %1019 = vmatprep.subr.mxu0 0.0
        %1020 = vmatpush1.msra.mxu0 0.0
        %1021 = vmatprep.subr.mxu0 0.0
        %1022 = vmatpush1.msra.mxu0 0.0
        %1023 = vmatprep.subr.mxu0 0.0
        %1024 = vmatpush1.msra.mxu0 0.0
        %1025 = vmatprep.mubr.f32.mxu0 0.0
        %1026 = vmatmul.mubr.f32.gmra.mrb[0].mxu0 %v934
        %v1027 = vpop.f32.mrb[0].mxu0
        %v1028 = vadd.f32 %v959, %v1027
        %v1029 = vpop.f32.mrb[0].mxu0
        %1030 = vmatprep.mubr.f32.mxu0 0.0
        %1031 = vmatmul.mubr.f32.gmra.mrb[0].mxu0 %v935
        %v1032 = vpop.f32.mrb[0].mxu0
        %v1033 = vadd.f32 %v959, %v1032
        %v1034 = vpop.f32.mrb[0].mxu0
        %1035 = vmatprep.mubr.f32.mxu0 0.0
        %1036 = vmatmul.mubr.f32.gmra.mrb[0].mxu0 %v936
        %v1037 = vpop.f32.mrb[0].mxu0
        %v1038 = vadd.f32 %v959, %v1037
        %v1039 = vpop.f32.mrb[0].mxu0
        %1040 = vmatprep.mubr.f32.mxu0 0.0
        %1041 = vmatmul.mubr.f32.gmra.mrb[0].mxu0 %v937
        %v1042 = vpop.f32.mrb[0].mxu0
        %v1043 = vadd.f32 %v959, %v1042
        %v1044 = vpop.f32.mrb[0].mxu0
        %1045 = vdwg.mxu0
        %1046 = vadd.xlane.f32.xlu0 %v1028
        %v1047 = vpop.xlane.xlu0 %1046
        %1048 = vadd.xlane.f32.xlu0 %v1033
        %v1049 = vpop.xlane.xlu0 %1048
        %1050 = vadd.xlane.f32.xlu0 %v1038
        %v1051 = vpop.xlane.xlu0 %1050
        %1052 = vadd.xlane.f32.xlu0 %v1043
        %v1053 = vpop.xlane.xlu0 %1052
        %v1054 = vmul.f32 %v1047, 0.03125
        %v1055 = vmul.f32 %v1049, 0.03125
        %v1056 = vmul.f32 %v1051, 0.03125
        %v1057 = vmul.f32 %v1053, 0.03125
        %v1058 = vlaneseq
        %v1059 = vand.u32 %v1058, 127
        %vm1060 = vcmp.lt.s32.totalorder %v1059, 32
        %v1061 = vsub.f32 %v1028, %v1054
        %v1062 = vsub.f32 %v1033, %v1055
        %v1063 = vsub.f32 %v1038, %v1056
        %v1064 = vsub.f32 %v1043, %v1057
        %v1065 = vsel %vm1060, %v1061, 0.0
        %v1066 = vsel %vm1060, %v1062, 0.0
        %v1067 = vsel %vm1060, %v1063, 0.0
        %v1068 = vsel %vm1060, %v1064, 0.0
        %v1069 = vmul.f32 %v1065, %v1065
        %v1070 = vmul.f32 %v1066, %v1066
        %v1071 = vmul.f32 %v1067, %v1067
        %v1072 = vmul.f32 %v1068, %v1068
        %1073 = vadd.xlane.f32.xlu0 %v1069
        %v1074 = vpop.xlane.xlu0 %1073
        %1075 = vadd.xlane.f32.xlu0 %v1070
        %v1076 = vpop.xlane.xlu0 %1075
        %1077 = vadd.xlane.f32.xlu0 %v1071
        %v1078 = vpop.xlane.xlu0 %1077
        %1079 = vadd.xlane.f32.xlu0 %v1072
        %v1080 = vpop.xlane.xlu0 %1079
        %v1081 = vmul.f32 %v1074, 0.03125
        %v1082 = vmul.f32 %v1076, 0.03125
        %v1083 = vmul.f32 %v1078, 0.03125
        %v1084 = vmul.f32 %v1080, 0.03125
        %v1085 = vadd.f32 %v1081, 1e-05
        %v1086 = vadd.f32 %v1082, 1e-05
        %v1087 = vadd.f32 %v1083, 1e-05
        %v1088 = vadd.f32 %v1084, 1e-05
        %v1089 = vrsqrt.pop %v1085
        %v1090 = vrsqrt.pop %v1086
        %v1091 = vrsqrt.pop %v1087
        %v1092 = vrsqrt.pop %v1088
        %v1093 = vmul.f32 %v1065, %v1089
        %v1094 = vmul.f32 %v1066, %v1090
        %v1095 = vmul.f32 %v1067, %v1091
        %v1096 = vmul.f32 %v1068, %v1092
        %v1097 = vld [vmem:[%s10] sm:$0x1]
        %v1099 = vlaneseq
        %v1100 = vshrl.u32 %v1099, 7
        %v1101 = vsub.s32 0, %v1100
        %v1102 = vrot.slane %v1097, %v1101
        %v1104 = vmul.f32 %v1093, %v1102
        %v1105 = vmul.f32 %v1094, %v1102
        %v1106 = vmul.f32 %v1095, %v1102
        %v1107 = vmul.f32 %v1096, %v1102
        %v1108 = vld [vmem:[%s11] sm:$0x1]
        %v1110 = vlaneseq
        %v1111 = vshrl.u32 %v1110, 7
        %v1112 = vsub.s32 0, %v1111
        %v1113 = vrot.slane %v1108, %v1112
        %v1115 = vadd.f32 %v1104, %v1113
        %v1116 = vadd.f32 %v1105, %v1113
        %v1117 = vadd.f32 %v1106, %v1113
        %v1118 = vadd.f32 %v1107, %v1113
        %v1119 = vadd.f32 %v1115, %v689
        %v1120 = vadd.f32 %v1116, %v690
        %v1121 = vadd.f32 %v1117, %v691
        %v1122 = vadd.f32 %v1118, %v692
        %1123 = vst [vmem:[%s533] sm:$0xff] %v1119
        %1124 = vst [vmem:[%s533 + $0x8] sm:$0xff] %v1120
        %1125 = vst [vmem:[%s533 + $0x10] sm:$0xff] %v1121
        %1126 = vst [vmem:[%s533 + $0x18] sm:$0xff] %v1122
      $region72: #{mesh_node_block.1} parent=59 // pred_fallthru
        _
      %s1127 = smul.u32 4, %s37
      %p1128 = scmp.lt.s32.totalorder %s1127, 7
      %s1129 = scalar_select %p1128, %s1127, 7
      %s1130 = smul.addr %s1129, 8
      %s1131 = scalar_lea.vmem %s12, %s1130
      // Predicated region
      $region73: #{mesh_node_block.1} parent=59 // pred_check
        %p1132 = pneg %p320
      $region74: #{mesh_node_block.1} parent=59 // pred_check_branch
        %1134 = sbr.rel (%p1132) target = $region76
      $region75: #{mesh_node_block.1} parent=59 // pred_region
        %s1135 = smul.u32 4, %s37
      $region76: #{mesh_node_block.1} parent=59 // pred_fallthru
        _
    $region60: #{mesh_node_block.1} parent=5 // pred_fallthru
      _
    %p1136 = scmp.le.s32.totalorder 2, %s28
    // Predicated region
    $region77: #{mesh_node_block.1} parent=5 // pred_check
      %p1137 = pneg %p1136
    $region78: #{mesh_node_block.1} parent=5 // pred_check_branch
      %1139 = sbr.rel (%p1137) target = $region80
    $region79: #{mesh_node_block.1} parent=5 // pred_region
      %s1140 = ssub.s32 %s28, 2
      // Predicated region
      $region81: #{mesh_node_block.1} parent=79 // pred_check
        %p1141 = pneg %p326
      $region82: #{mesh_node_block.1} parent=79 // pred_check_branch
        %1143 = sbr.rel (%p1141) target = $region84
      $region83: #{mesh_node_block.1} parent=79 // pred_region
        %s1144 = smul.u32 4, %s39
        %p1145 = scmp.lt.s32.totalorder %s1144, 7
        %s1146 = scalar_select %p1145, %s1144, 7
        %s1147 = smul.addr %s1146, 8
        %s1148 = scalar_lea.vmem %s12, %s1147
      $region84: #{mesh_node_block.1} parent=79 // pred_fallthru
        _
    $region80: #{mesh_node_block.1} parent=5 // pred_fallthru
      _
  $region6: #{mesh_node_block.1} parent=0 // loop_footer
    %s32 = sadd.s32 1, %s28
  $region7: #{mesh_node_block.1} parent=0 // loop_footer_branch
    %27 = sbr.rel target = $region3
  $region8: #{mesh_node_block.1} parent=0 // loop_exit
    _

</llo_original>
